<compile_context>
chip_gen: v7x
topology: tpu7x:2x2x1
jax: 0.10.0
libtpu: 0.0.40
codegen_flags: <defaults>
</compile_context>

<pallas_src>
import functools

import jax
import jax.numpy as jnp
from jax.experimental import pallas as pl
from jax.experimental.pallas import tpu as pltpu


_VMEM = pl.BlockSpec(memory_space=pltpu.MemorySpace.VMEM)


# ----------------------------------------------------------------------------
# shared attention math (traced inside kernels)
# ----------------------------------------------------------------------------
def _attention_body(s_h, s_c, enc_out, enc_feat, enc_mask, coverage,
                    Wdec_h, Wdec_c, bdec, wc, vw):
    """Additive attention with coverage.

    s_h, s_c: [B, H] (logically concatenated to s_t_hat = [B, 2H])
    enc_out / enc_feat: [B, T, 2H], enc_mask / coverage: [B, T]
    """
    f32 = jnp.float32
    # decode_proj(s_t_hat)  (split matmul instead of lane concat)
    dec_fea = (jnp.dot(s_h, Wdec_h, preferred_element_type=f32)
               + jnp.dot(s_c, Wdec_c, preferred_element_type=f32)
               + bdec)                                          # [B, 2H]
    att = enc_feat + dec_fea[:, None, :]                        # [B, T, 2H]
    # coverage feature: W_c(coverage.view(-1,1)) == coverage * w_c (rank-1)
    att = att + coverage[:, :, None] * wc[None, :, :]           # [B, T, 2H]
    e = jnp.tanh(att)
    scores = jnp.sum(e * vw[None, :, :], axis=-1)               # [B, T]  (v(e))
    # softmax over T, then mask + renormalise (eps guards all-masked rows)
    scores = scores - jnp.max(scores, axis=1, keepdims=True)
    exp_s = jnp.exp(scores)
    sm = exp_s / jnp.sum(exp_s, axis=1, keepdims=True)
    attn_masked = sm * enc_mask
    attn = attn_masked / (jnp.sum(attn_masked, axis=1, keepdims=True) + 1e-12)
    # c_t = bmm(attn, encoder_outputs) routed through the MXU
    c_t = jnp.einsum('bqt,btd->bqd', attn[:, None, :], enc_out,
                     preferred_element_type=f32)[:, 0, :]       # [B, 2H]
    cov_next = coverage + attn
    return c_t, attn, cov_next


# ----------------------------------------------------------------------------
# kernel 1: x_context + LSTM step + attention + p_gen + out1
# ----------------------------------------------------------------------------
def _decoder_step_kernel(
    y_embd_ref, c_t_1_ref, h_prev_ref, c_prev_ref,
    enc_out_ref, enc_feat_ref, enc_mask_ref, coverage_ref,
    Wxc_c_ref, Wxc_y_ref, bxc_ref,
    Wih_ref, Whh_ref, blstm_ref,
    Wdec_h_ref, Wdec_c_ref, bdec_ref, wc_ref, vw_ref,
    wpg_ct_ref, wpg_h_ref, wpg_c_ref, wpg_x_ref, bpg_ref,
    Wo1_h_ref, Wo1_ct_ref, bo1_ref,
    out1_ref, slab_ref, attn_ref, cov_ref,
    *, hidden_dim,
):
    f32 = jnp.float32
    H = hidden_dim
    y_embd = y_embd_ref[...]
    c_t_1 = c_t_1_ref[...]
    h_prev = h_prev_ref[...]
    c_prev = c_prev_ref[...]

    # x = x_context(cat(c_t_1, y_t_1_embd))  (split matmul)
    x = (jnp.dot(c_t_1, Wxc_c_ref[...], preferred_element_type=f32)
         + jnp.dot(y_embd, Wxc_y_ref[...], preferred_element_type=f32)
         + bxc_ref[...])                                        # [B, E]

    # single-step LSTM; gates packed along lanes as [i | f | g | o] (4H wide)
    gates = (jnp.dot(x, Wih_ref[...], preferred_element_type=f32)
             + jnp.dot(h_prev, Whh_ref[...], preferred_element_type=f32)
             + blstm_ref[...])                                  # [B, 4H]
    i_g = jax.nn.sigmoid(gates[:, 0:H])
    f_g = jax.nn.sigmoid(gates[:, H:2 * H])
    g_g = jnp.tanh(gates[:, 2 * H:3 * H])
    o_g = jax.nn.sigmoid(gates[:, 3 * H:4 * H])
    c_new = f_g * c_prev + i_g * g_g
    h_new = o_g * jnp.tanh(c_new)                               # lstm_out (seq len 1)

    # attention with s_t_hat = cat(h_new, c_new)
    c_t, attn, cov_next = _attention_body(
        h_new, c_new, enc_out_ref[...], enc_feat_ref[...],
        enc_mask_ref[...], coverage_ref[...],
        Wdec_h_ref[...], Wdec_c_ref[...], bdec_ref[...], wc_ref[...], vw_ref[...])

    # p_gen = sigmoid(W [c_t ; s_t_hat ; x] + b)  -- VPU lane-reductions (no MXU)
    p_gen = jax.nn.sigmoid(
        jnp.sum(c_t * wpg_ct_ref[...], axis=-1, keepdims=True)
        + jnp.sum(h_new * wpg_h_ref[...], axis=-1, keepdims=True)
        + jnp.sum(c_new * wpg_c_ref[...], axis=-1, keepdims=True)
        + jnp.sum(x * wpg_x_ref[...], axis=-1, keepdims=True)
        + bpg_ref[...])                                         # [B, 1]

    # out1(cat(lstm_out, c_t)) -> cast once to bf16 for the vocab matmul
    out1 = (jnp.dot(h_new, Wo1_h_ref[...], preferred_element_type=f32)
            + jnp.dot(c_t, Wo1_ct_ref[...], preferred_element_type=f32)
            + bo1_ref[...])                                     # [B, H]
    out1_ref[...] = out1.astype(out1_ref.dtype)

    # single lane-dense state slab: [h_new | c_new | c_t | p_gen]
    slab_ref[...] = jnp.concatenate([h_new, c_new, c_t, p_gen], axis=-1)
    attn_ref[...] = attn
    cov_ref[...] = cov_next


# ----------------------------------------------------------------------------
# kernel 1b: attention only (eval / step==0 pre-attention branch)
# ----------------------------------------------------------------------------
def _attention_kernel(h_ref, c_ref, enc_out_ref, enc_feat_ref, mask_ref, cov_ref,
                      Wdec_h_ref, Wdec_c_ref, bdec_ref, wc_ref, vw_ref,
                      cov_next_ref):
    _, _, cov_next = _attention_body(
        h_ref[...], c_ref[...], enc_out_ref[...], enc_feat_ref[...],
        mask_ref[...], cov_ref[...],
        Wdec_h_ref[...], Wdec_c_ref[...], bdec_ref[...], wc_ref[...], vw_ref[...])
    cov_next_ref[...] = cov_next


# ----------------------------------------------------------------------------
# kernel 2a: vocab-tiled out2 matmul + per-tile softmax partials
# ----------------------------------------------------------------------------
def _vocab_logits_kernel(out1_ref, w_ref, b_ref,
                         logits_ref, m_ref, s_ref,
                         *, vocab_size, tile_v):
    j = pl.program_id(0)
    logits = (jnp.dot(out1_ref[...], w_ref[...], preferred_element_type=jnp.float32)
              + b_ref[...])                                     # [B, tile_v]
    col = j * tile_v + jax.lax.broadcasted_iota(jnp.int32, logits.shape, 1)
    valid = col < vocab_size
    masked = jnp.where(valid, logits, -1e30)
    m_j = jnp.max(masked, axis=1, keepdims=True)                # [B, 1]
    e = jnp.where(valid, jnp.exp(logits - m_j), 0.0)
    s_j = jnp.sum(e, axis=1, keepdims=True)                     # [B, 1]

    logits_ref[...] = logits
    # lane-dense (128-wide) partial-stat tiles; wrapper reads lane 0 of each tile
    m_ref[...] = jnp.broadcast_to(m_j, m_ref.shape)
    s_ref[...] = jnp.broadcast_to(s_j, s_ref.shape)


# ----------------------------------------------------------------------------
# kernel 2b: vocab-tiled normalize + pointer mixing + per-tile scatter_add
# ----------------------------------------------------------------------------
def _final_dist_kernel(p_gen_ref, logits_ref, m_ref, l_ref, attn_ref, ids_ref,
                       final_ref, *, vocab_size, tile_v):
    j = pl.program_id(0)
    p_gen = p_gen_ref[...]                                      # [B, 1]
    logits = logits_ref[...]                                    # [B, tile_v]
    col = j * tile_v + jax.lax.broadcasted_iota(jnp.int32, logits.shape, 1)
    valid = col < vocab_size

    # EUP reciprocal of the softmax denominator + one Newton step (full f32 acc)
    l_row = l_ref[...]                                          # [B, 1]
    inv_l = pl.reciprocal(l_row, approx=True)
    inv_l = inv_l * (2.0 - l_row * inv_l)
    vocab_dist = jnp.where(valid, jnp.exp(logits - m_ref[...]) * inv_l, 0.0)

    attn_w = (1.0 - p_gen) * attn_ref[...]                      # [B, T]
    ids = ids_ref[...]                                          # [B, T] int32
    # scatter_add(1, enc_batch_extend_vocab, attn_w) restricted to this tile's
    # column range; contraction over T routed through the MXU.
    onehot = (ids[:, :, None] == col[:, None, :]).astype(jnp.float32)  # [B,T,tile_v]
    scatter = jnp.einsum('bqt,btv->bqv', attn_w[:, None, :], onehot,
                         preferred_element_type=jnp.float32)[:, 0, :]

    final_ref[...] = p_gen * vocab_dist + scatter


# ----------------------------------------------------------------------------
# parameter init (deterministic, matching the shapes in Decoder.__init__)
# ----------------------------------------------------------------------------
def init_decoder_params(key, vocab_size, emb_dim, hidden_dim, max_oov=0, tile_v=128):
    V, E, H = vocab_size, emb_dim, hidden_dim
    assert tile_v % 128 == 0
    keys = iter(jax.random.split(key, 32))

    def nrm(shape, std):
        return (std * jax.random.normal(next(keys), shape)).astype(jnp.float32)

    def uni(shape, bound):
        return jax.random.uniform(next(keys), shape, jnp.float32, -bound, bound)

    p = {}
    p["emb"] = nrm((V, E), 1e-4)                                # init_wt_normal
    # x_context: Linear(2H+E, E)  (split: c_t_1 part, embedding part)
    bx = 1.0 / jnp.sqrt(2 * H + E)
    p["Wxc_c"] = uni((2 * H, E), bx)
    p["Wxc_y"] = uni((E, E), bx)
    p["bxc"] = uni((1, E), bx)
    # LSTM(E -> H): gate-packed weights [in, 4H] (i|f|g|o); bias = b_ih + b_hh
    p["Wih"] = uni((E, 4 * H), 0.02)
    p["Whh"] = uni((H, 4 * H), 0.02)
    p["blstm"] = jnp.zeros((1, 4 * H), jnp.float32).at[:, H:2 * H].set(2.0)
    # attention: decode_proj Linear(2H,2H), W_c Linear(1,2H,no bias), v Linear(2H,1)
    bd = 1.0 / jnp.sqrt(2 * H)
    p["Wdec_h"] = uni((H, 2 * H), bd)
    p["Wdec_c"] = uni((H, 2 * H), bd)
    p["bdec"] = uni((1, 2 * H), bd)
    p["wc"] = uni((1, 2 * H), 1.0)
    p["vw"] = uni((1, 2 * H), bd)
    # p_gen_linear: Linear(4H+E, 1) split over [c_t ; h ; c ; x], row vectors (VPU)
    bp = 1.0 / jnp.sqrt(4 * H + E)
    p["wpg_ct"] = uni((1, 2 * H), bp)
    p["wpg_h"] = uni((1, H), bp)
    p["wpg_c"] = uni((1, H), bp)
    p["wpg_x"] = uni((1, E), bp)
    p["bpg"] = uni((1, 1), bp)
    # out1: Linear(3H, H) split over [lstm_out ; c_t]
    bo = 1.0 / jnp.sqrt(3 * H)
    p["Wo1_h"] = uni((H, H), bo)
    p["Wo1_ct"] = uni((2 * H, H), bo)
    p["bo1"] = uni((1, H), bo)
    # out2: Linear(H, V), init_linear_wt std=1e-4
    p["Wo2"] = nrm((H, V), 1e-4)
    p["bo2"] = nrm((1, V), 1e-4)
    # precomputed once (NOT per decode step): padded-to-tile, bf16 vocab weight
    Vext = V + max_oov
    VextP = ((Vext + tile_v - 1) // tile_v) * tile_v
    p["Wo2p"] = jnp.pad(p["Wo2"], ((0, 0), (0, VextP - V))).astype(jnp.bfloat16)
    p["bo2p"] = jnp.pad(p["bo2"], ((0, 0), (0, VextP - V)))
    return p


# ----------------------------------------------------------------------------
# forward wrapper (mirrors Decoder.forward)
# ----------------------------------------------------------------------------
def decoder_forward(params, y_t_1, s_t_1, encoder_outputs, encoder_feature,
                    enc_padding_mask, c_t_1, extra_zeros, enc_batch_extend_vocab,
                    coverage, step, training=True, tile_v=128):
    B, T, twoH = encoder_outputs.shape
    H = twoH // 2
    h_prev = s_t_1[0].reshape(B, H)
    c_prev = s_t_1[1].reshape(B, H)
    enc_feat = encoder_feature.reshape(B, T, twoH)

    vmem_step = 48 * 1024 * 1024   # headroom for v7x's 64 MiB physical VMEM
    vmem_vocab = 32 * 1024 * 1024

    # eval-mode step 0: run attention once with s_t_1 just to advance coverage
    if (not training) and step == 0:
        coverage = pl.pallas_call(
            _attention_kernel,
            out_shape=jax.ShapeDtypeStruct((B, T), jnp.float32),
            in_specs=[_VMEM] * 11,
            out_specs=_VMEM,
            compiler_params=pltpu.CompilerParams(vmem_limit_bytes=vmem_step),
        )(h_prev, c_prev, encoder_outputs, enc_feat, enc_padding_mask, coverage,
          params["Wdec_h"], params["Wdec_c"], params["bdec"], params["wc"], params["vw"])

    # embedding lookup (gather) kept as plain-JAX glue
    y_embd = params["emb"][y_t_1]

    # TODO(synk): for very long encoder sequences, additionally tile T with an
    # online-softmax accumulator; full [B,T,2H] residency is fine at these sizes.
    out1_bf16, slab, attn_dist, cov_next = pl.pallas_call(
        functools.partial(_decoder_step_kernel, hidden_dim=H),
        out_shape=(
            jax.ShapeDtypeStruct((B, H), jnp.bfloat16),         # out1 (for out2 pass)
            jax.ShapeDtypeStruct((B, 4 * H + 1), jnp.float32),  # h|c|c_t|p_gen
            jax.ShapeDtypeStruct((B, T), jnp.float32),          # attn_dist
            jax.ShapeDtypeStruct((B, T), jnp.float32),          # coverage_next
        ),
        in_specs=[_VMEM] * 27,
        out_specs=[_VMEM] * 4,
        compiler_params=pltpu.CompilerParams(vmem_limit_bytes=vmem_step),
    )(y_embd, c_t_1, h_prev, c_prev,
      encoder_outputs, enc_feat, enc_padding_mask, coverage,
      params["Wxc_c"], params["Wxc_y"], params["bxc"],
      params["Wih"], params["Whh"], params["blstm"],
      params["Wdec_h"], params["Wdec_c"], params["bdec"], params["wc"], params["vw"],
      params["wpg_ct"], params["wpg_h"], params["wpg_c"], params["wpg_x"], params["bpg"],
      params["Wo1_h"], params["Wo1_ct"], params["bo1"])

    h_new = slab[:, 0:H]
    c_new = slab[:, H:2 * H]
    c_t = slab[:, 2 * H:4 * H]
    p_gen = slab[:, 4 * H:4 * H + 1]

    if training or step > 0:
        coverage = cov_next

    # pointer-generator final distribution, tiled over the extended vocab
    V = params["Wo2"].shape[1]
    max_oov = 0 if extra_zeros is None else extra_zeros.shape[1]
    Vext = V + max_oov
    VextP = params["Wo2p"].shape[1]
    assert VextP % tile_v == 0 and VextP >= Vext
    num_tiles = VextP // tile_v

    # pass 1: out2 matmul per vocab tile + per-tile softmax partials
    logits, m_part_p, s_part_p = pl.pallas_call(
        functools.partial(_vocab_logits_kernel, vocab_size=V, tile_v=tile_v),
        grid=(num_tiles,),
        out_shape=(
            jax.ShapeDtypeStruct((B, VextP), jnp.float32),
            jax.ShapeDtypeStruct((B, num_tiles * 128), jnp.float32),
            jax.ShapeDtypeStruct((B, num_tiles * 128), jnp.float32),
        ),
        in_specs=[
            pl.BlockSpec((B, H), lambda j: (0, 0)),
            pl.BlockSpec((H, tile_v), lambda j: (0, j)),
            pl.BlockSpec((1, tile_v), lambda j: (0, j)),
        ],
        out_specs=[
            pl.BlockSpec((B, tile_v), lambda j: (0, j)),
            pl.BlockSpec((B, 128), lambda j: (0, j)),
            pl.BlockSpec((B, 128), lambda j: (0, j)),
        ],
        compiler_params=pltpu.CompilerParams(
            dimension_semantics=("parallel",), vmem_limit_bytes=vmem_vocab),
        cost_estimate=pl.CostEstimate(
            flops=2 * B * H * VextP,
            transcendentals=B * VextP,
            bytes_accessed=H * VextP * 2 + 3 * B * VextP * 4),
    )(out1_bf16, params["Wo2p"], params["bo2p"])

    # combine per-tile partial max / exp-sum (tiny [B, num_tiles] XLA reduce)
    m_part = m_part_p[:, ::128]
    s_part = s_part_p[:, ::128]
    m_row = jnp.max(m_part, axis=1, keepdims=True)
    l_row = jnp.sum(s_part * jnp.exp(m_part - m_row), axis=1, keepdims=True)

    ids = enc_batch_extend_vocab.astype(jnp.int32)

    # pass 2: normalize + p_gen mixing + per-tile scatter_add
    final_padded = pl.pallas_call(
        functools.partial(_final_dist_kernel, vocab_size=V, tile_v=tile_v),
        grid=(num_tiles,),
        out_shape=jax.ShapeDtypeStruct((B, VextP), jnp.float32),
        in_specs=[
            pl.BlockSpec((B, 1), lambda j: (0, 0)),
            pl.BlockSpec((B, tile_v), lambda j: (0, j)),
            pl.BlockSpec((B, 1), lambda j: (0, 0)),
            pl.BlockSpec((B, 1), lambda j: (0, 0)),
            pl.BlockSpec((B, T), lambda j: (0, 0)),
            pl.BlockSpec((B, T), lambda j: (0, 0)),
        ],
        out_specs=pl.BlockSpec((B, tile_v), lambda j: (0, j)),
        compiler_params=pltpu.CompilerParams(
            dimension_semantics=("parallel",), vmem_limit_bytes=vmem_vocab),
        cost_estimate=pl.CostEstimate(
            flops=2 * B * T * VextP + 4 * B * VextP,
            transcendentals=B * VextP,
            bytes_accessed=2 * B * VextP * 4 + 2 * B * T * 4),
    )(p_gen, logits, m_row, l_row, attn_dist, ids)

    final_dist = final_padded[:, :Vext]

    s_t = (h_new[None, :, :], c_new[None, :, :])
    return final_dist, s_t, c_t, attn_dist, p_gen, coverage


# ----------------------------------------------------------------------------
if __name__ == "__main__":
    B, T = 2, 8            # batch, max(seq_lens)
    V, E, H = 256, 16, 32  # vocab_size, emb_dim, hidden_dim (small test sizes)
    MAX_OOV = 8
    TILE_V = 128           # vocab tile (use 512-2048 at production vocab sizes)

    key = jax.random.PRNGKey(0)
    kp, k1, k2, k3, k4, k5, k6 = jax.random.split(key, 7)
    params = init_decoder_params(kp, V, E, H, max_oov=MAX_OOV, tile_v=TILE_V)

    y_t_1 = jax.random.randint(k1, (B,), 0, V)
    h0 = 0.1 * jax.random.normal(k2, (1, B, H), jnp.float32)
    c0 = 0.1 * jax.random.normal(k3, (1, B, H), jnp.float32)
    encoder_outputs = jax.random.normal(k4, (B, T, 2 * H), jnp.float32)
    encoder_feature = encoder_outputs.reshape(B * T, 2 * H)
    enc_padding_mask = jnp.ones((B, T), jnp.float32).at[1, T - 2:].set(0.0)
    c_t_1 = 0.1 * jax.random.normal(k5, (B, 2 * H), jnp.float32)
    extra_zeros = jnp.zeros((B, MAX_OOV), jnp.float32)
    enc_batch_extend_vocab = jax.random.randint(k6, (B, T), 0, V + MAX_OOV)
    coverage = jnp.zeros((B, T), jnp.float32)

    outs = decoder_forward(params, y_t_1, (h0, c0), encoder_outputs, encoder_feature,
                           enc_padding_mask, c_t_1, extra_zeros, enc_batch_extend_vocab,
                           coverage, step=1, training=True, tile_v=TILE_V)
    final_dist, s_t, c_t, attn_dist, p_gen, cov = jax.block_until_ready(outs)

    # sanity: pointer-gen mixture is a proper distribution (rows sum to 1)
    assert final_dist.shape == (B, V + MAX_OOV)
    assert bool(jnp.allclose(jnp.sum(final_dist, axis=1), 1.0, atol=1e-3))
    assert s_t[0].shape == (1, B, H) and c_t.shape == (B, 2 * H)
    assert p_gen.shape == (B, 1) and attn_dist.shape == (B, T)
    print("KERNEL_OK")
</pallas_src>

<mosaic_0001>
module attributes {stable_mosaic.version = 11 : i64} {
  func.func @_decoder_step_kernel(%arg0: memref<2x16xf32, #tpu.memory_space<vmem>>, %arg1: memref<2x64xf32, #tpu.memory_space<vmem>>, %arg2: memref<2x32xf32, #tpu.memory_space<vmem>>, %arg3: memref<2x32xf32, #tpu.memory_space<vmem>>, %arg4: memref<2x8x64xf32, #tpu.memory_space<vmem>>, %arg5: memref<2x8x64xf32, #tpu.memory_space<vmem>>, %arg6: memref<2x8xf32, #tpu.memory_space<vmem>>, %arg7: memref<2x8xf32, #tpu.memory_space<vmem>>, %arg8: memref<64x16xf32, #tpu.memory_space<vmem>>, %arg9: memref<16x16xf32, #tpu.memory_space<vmem>>, %arg10: memref<1x16xf32, #tpu.memory_space<vmem>>, %arg11: memref<16x128xf32, #tpu.memory_space<vmem>>, %arg12: memref<32x128xf32, #tpu.memory_space<vmem>>, %arg13: memref<1x128xf32, #tpu.memory_space<vmem>>, %arg14: memref<32x64xf32, #tpu.memory_space<vmem>>, %arg15: memref<32x64xf32, #tpu.memory_space<vmem>>, %arg16: memref<1x64xf32, #tpu.memory_space<vmem>>, %arg17: memref<1x64xf32, #tpu.memory_space<vmem>>, %arg18: memref<1x64xf32, #tpu.memory_space<vmem>>, %arg19: memref<1x64xf32, #tpu.memory_space<vmem>>, %arg20: memref<1x32xf32, #tpu.memory_space<vmem>>, %arg21: memref<1x32xf32, #tpu.memory_space<vmem>>, %arg22: memref<1x16xf32, #tpu.memory_space<vmem>>, %arg23: memref<1x1xf32, #tpu.memory_space<vmem>>, %arg24: memref<32x32xf32, #tpu.memory_space<vmem>>, %arg25: memref<64x32xf32, #tpu.memory_space<vmem>>, %arg26: memref<1x32xf32, #tpu.memory_space<vmem>>, %arg27: memref<2x32xbf16, #tpu.memory_space<vmem>>, %arg28: memref<2x129xf32, #tpu.memory_space<vmem>>, %arg29: memref<2x8xf32, #tpu.memory_space<vmem>>, %arg30: memref<2x8xf32, #tpu.memory_space<vmem>>) attributes {dimension_semantics = [], scalar_prefetch = 0 : i64, scratch_operands = 0 : i64, tpu.core_type = #tpu.core_type<tc>} {
    %c0 = arith.constant 0 : index
    %c0_0 = arith.constant 0 : index
    %0 = vector.load %arg0[%c0, %c0_0] : memref<2x16xf32, #tpu.memory_space<vmem>>, vector<2x16xf32>
    %c0_1 = arith.constant 0 : index
    %c0_2 = arith.constant 0 : index
    %1 = vector.load %arg1[%c0_1, %c0_2] : memref<2x64xf32, #tpu.memory_space<vmem>>, vector<2x64xf32>
    %c0_3 = arith.constant 0 : index
    %c0_4 = arith.constant 0 : index
    %2 = vector.load %arg2[%c0_3, %c0_4] : memref<2x32xf32, #tpu.memory_space<vmem>>, vector<2x32xf32>
    %c0_5 = arith.constant 0 : index
    %c0_6 = arith.constant 0 : index
    %3 = vector.load %arg3[%c0_5, %c0_6] : memref<2x32xf32, #tpu.memory_space<vmem>>, vector<2x32xf32>
    %c0_7 = arith.constant 0 : index
    %c0_8 = arith.constant 0 : index
    %4 = vector.load %arg8[%c0_7, %c0_8] : memref<64x16xf32, #tpu.memory_space<vmem>>, vector<64x16xf32>
    %cst = arith.constant dense<0.000000e+00> : vector<2x16xf32>
    %5 = tpu.matmul %1, %4, %cst {dimension_numbers = #tpu.dot_dimension_numbers<[1], [0], [0], [1], [0, 0, 1, 1], [], []>} : vector<2x64xf32>, vector<64x16xf32>, vector<2x16xf32> -> vector<2x16xf32>
    %c0_9 = arith.constant 0 : index
    %c0_10 = arith.constant 0 : index
    %6 = vector.load %arg9[%c0_9, %c0_10] : memref<16x16xf32, #tpu.memory_space<vmem>>, vector<16x16xf32>
    %cst_11 = arith.constant dense<0.000000e+00> : vector<2x16xf32>
    %7 = tpu.matmul %0, %6, %cst_11 {dimension_numbers = #tpu.dot_dimension_numbers<[1], [0], [0], [1], [0, 0, 1, 1], [], []>} : vector<2x16xf32>, vector<16x16xf32>, vector<2x16xf32> -> vector<2x16xf32>
    %8 = arith.addf %5, %7 : vector<2x16xf32>
    %c0_12 = arith.constant 0 : index
    %c0_13 = arith.constant 0 : index
    %9 = vector.load %arg10[%c0_12, %c0_13] : memref<1x16xf32, #tpu.memory_space<vmem>>, vector<1x16xf32>
    %10 = vector.broadcast %9 : vector<1x16xf32> to vector<2x16xf32>
    %11 = arith.addf %8, %10 : vector<2x16xf32>
    %c0_14 = arith.constant 0 : index
    %c0_15 = arith.constant 0 : index
    %12 = vector.load %arg11[%c0_14, %c0_15] : memref<16x128xf32, #tpu.memory_space<vmem>>, vector<16x128xf32>
    %cst_16 = arith.constant dense<0.000000e+00> : vector<2x128xf32>
    %13 = tpu.matmul %11, %12, %cst_16 {dimension_numbers = #tpu.dot_dimension_numbers<[1], [0], [0], [1], [0, 0, 1, 1], [], []>} : vector<2x16xf32>, vector<16x128xf32>, vector<2x128xf32> -> vector<2x128xf32>
    %c0_17 = arith.constant 0 : index
    %c0_18 = arith.constant 0 : index
    %14 = vector.load %arg12[%c0_17, %c0_18] : memref<32x128xf32, #tpu.memory_space<vmem>>, vector<32x128xf32>
    %cst_19 = arith.constant dense<0.000000e+00> : vector<2x128xf32>
    %15 = tpu.matmul %2, %14, %cst_19 {dimension_numbers = #tpu.dot_dimension_numbers<[1], [0], [0], [1], [0, 0, 1, 1], [], []>} : vector<2x32xf32>, vector<32x128xf32>, vector<2x128xf32> -> vector<2x128xf32>
    %16 = arith.addf %13, %15 : vector<2x128xf32>
    %c0_20 = arith.constant 0 : index
    %c0_21 = arith.constant 0 : index
    %17 = vector.load %arg13[%c0_20, %c0_21] : memref<1x128xf32, #tpu.memory_space<vmem>>, vector<1x128xf32>
    %18 = vector.broadcast %17 : vector<1x128xf32> to vector<2x128xf32>
    %19 = arith.addf %16, %18 : vector<2x128xf32>
    %20 = vector.extract_strided_slice %19 {offsets = [0, 0], sizes = [2, 32], strides = [1, 1]} : vector<2x128xf32> to vector<2x32xf32>
    %21 = arith.negf %20 : vector<2x32xf32>
    %22 = math.exp %21 : vector<2x32xf32>
    %cst_22 = arith.constant 1.000000e+00 : f32
    %23 = vector.broadcast %cst_22 : f32 to vector<2x32xf32>
    %24 = arith.addf %23, %22 : vector<2x32xf32>
    %25 = arith.divf %23, %24 : vector<2x32xf32>
    %26 = vector.extract_strided_slice %19 {offsets = [0, 32], sizes = [2, 32], strides = [1, 1]} : vector<2x128xf32> to vector<2x32xf32>
    %27 = arith.negf %26 : vector<2x32xf32>
    %28 = math.exp %27 : vector<2x32xf32>
    %cst_23 = arith.constant 1.000000e+00 : f32
    %29 = vector.broadcast %cst_23 : f32 to vector<2x32xf32>
    %30 = arith.addf %29, %28 : vector<2x32xf32>
    %31 = arith.divf %29, %30 : vector<2x32xf32>
    %32 = vector.extract_strided_slice %19 {offsets = [0, 64], sizes = [2, 32], strides = [1, 1]} : vector<2x128xf32> to vector<2x32xf32>
    %33 = math.tanh %32 : vector<2x32xf32>
    %34 = vector.extract_strided_slice %19 {offsets = [0, 96], sizes = [2, 32], strides = [1, 1]} : vector<2x128xf32> to vector<2x32xf32>
    %35 = arith.negf %34 : vector<2x32xf32>
    %36 = math.exp %35 : vector<2x32xf32>
    %cst_24 = arith.constant 1.000000e+00 : f32
    %37 = vector.broadcast %cst_24 : f32 to vector<2x32xf32>
    %38 = arith.addf %37, %36 : vector<2x32xf32>
    %39 = arith.divf %37, %38 : vector<2x32xf32>
    %40 = arith.mulf %31, %3 : vector<2x32xf32>
    %41 = arith.mulf %25, %33 : vector<2x32xf32>
    %42 = arith.addf %40, %41 : vector<2x32xf32>
    %43 = math.tanh %42 : vector<2x32xf32>
    %44 = arith.mulf %39, %43 : vector<2x32xf32>
    %c0_25 = arith.constant 0 : index
    %c0_26 = arith.constant 0 : index
    %c0_27 = arith.constant 0 : index
    %45 = vector.load %arg4[%c0_25, %c0_26, %c0_27] : memref<2x8x64xf32, #tpu.memory_space<vmem>>, vector<2x8x64xf32>
    %c0_28 = arith.constant 0 : index
    %c0_29 = arith.constant 0 : index
    %c0_30 = arith.constant 0 : index
    %46 = vector.load %arg5[%c0_28, %c0_29, %c0_30] : memref<2x8x64xf32, #tpu.memory_space<vmem>>, vector<2x8x64xf32>
    %c0_31 = arith.constant 0 : index
    %c0_32 = arith.constant 0 : index
    %47 = vector.load %arg6[%c0_31, %c0_32] : memref<2x8xf32, #tpu.memory_space<vmem>>, vector<2x8xf32>
    %c0_33 = arith.constant 0 : index
    %c0_34 = arith.constant 0 : index
    %48 = vector.load %arg7[%c0_33, %c0_34] : memref<2x8xf32, #tpu.memory_space<vmem>>, vector<2x8xf32>
    %c0_35 = arith.constant 0 : index
    %c0_36 = arith.constant 0 : index
    %49 = vector.load %arg14[%c0_35, %c0_36] : memref<32x64xf32, #tpu.memory_space<vmem>>, vector<32x64xf32>
    %c0_37 = arith.constant 0 : index
    %c0_38 = arith.constant 0 : index
    %50 = vector.load %arg15[%c0_37, %c0_38] : memref<32x64xf32, #tpu.memory_space<vmem>>, vector<32x64xf32>
    %c0_39 = arith.constant 0 : index
    %c0_40 = arith.constant 0 : index
    %51 = vector.load %arg16[%c0_39, %c0_40] : memref<1x64xf32, #tpu.memory_space<vmem>>, vector<1x64xf32>
    %c0_41 = arith.constant 0 : index
    %c0_42 = arith.constant 0 : index
    %52 = vector.load %arg17[%c0_41, %c0_42] : memref<1x64xf32, #tpu.memory_space<vmem>>, vector<1x64xf32>
    %c0_43 = arith.constant 0 : index
    %c0_44 = arith.constant 0 : index
    %53 = vector.load %arg18[%c0_43, %c0_44] : memref<1x64xf32, #tpu.memory_space<vmem>>, vector<1x64xf32>
    %cst_45 = arith.constant dense<0.000000e+00> : vector<2x64xf32>
    %54 = tpu.matmul %44, %49, %cst_45 {dimension_numbers = #tpu.dot_dimension_numbers<[1], [0], [0], [1], [0, 0, 1, 1], [], []>} : vector<2x32xf32>, vector<32x64xf32>, vector<2x64xf32> -> vector<2x64xf32>
    %cst_46 = arith.constant dense<0.000000e+00> : vector<2x64xf32>
    %55 = tpu.matmul %42, %50, %cst_46 {dimension_numbers = #tpu.dot_dimension_numbers<[1], [0], [0], [1], [0, 0, 1, 1], [], []>} : vector<2x32xf32>, vector<32x64xf32>, vector<2x64xf32> -> vector<2x64xf32>
    %56 = arith.addf %54, %55 : vector<2x64xf32>
    %57 = vector.broadcast %51 : vector<1x64xf32> to vector<2x64xf32>
    %58 = arith.addf %56, %57 : vector<2x64xf32>
    %59 = vector.shape_cast %58 : vector<2x64xf32> to vector<2x1x64xf32>
    %60 = vector.broadcast %59 : vector<2x1x64xf32> to vector<2x8x64xf32>
    %61 = arith.addf %46, %60 : vector<2x8x64xf32>
    %62 = vector.shape_cast %48 : vector<2x8xf32> to vector<2x8x1xf32>
    %63 = vector.shape_cast %52 : vector<1x64xf32> to vector<1x1x64xf32>
    %64 = vector.broadcast %62 : vector<2x8x1xf32> to vector<2x8x64xf32>
    %65 = vector.broadcast %63 : vector<1x1x64xf32> to vector<2x8x64xf32>
    %66 = arith.mulf %64, %65 : vector<2x8x64xf32>
    %67 = arith.addf %61, %66 : vector<2x8x64xf32>
    %68 = math.tanh %67 : vector<2x8x64xf32>
    %69 = vector.shape_cast %53 : vector<1x64xf32> to vector<1x1x64xf32>
    %70 = vector.broadcast %69 : vector<1x1x64xf32> to vector<2x8x64xf32>
    %71 = arith.mulf %68, %70 : vector<2x8x64xf32>
    %cst_47 = arith.constant dense<0.000000e+00> : vector<2x8xf32>
    %72 = vector.multi_reduction <add>, %71, %cst_47 [2] : vector<2x8x64xf32> to vector<2x8xf32>
    %cst_48 = arith.constant dense<0xFF800000> : vector<2xf32>
    %73 = vector.multi_reduction <maximumf>, %72, %cst_48 [1] : vector<2x8xf32> to vector<2xf32>
    %74 = vector.shape_cast %73 : vector<2xf32> to vector<2x1xf32>
    %75 = vector.broadcast %74 : vector<2x1xf32> to vector<2x8xf32>
    %76 = arith.subf %72, %75 : vector<2x8xf32>
    %77 = math.exp %76 : vector<2x8xf32>
    %cst_49 = arith.constant dense<0.000000e+00> : vector<2xf32>
    %78 = vector.multi_reduction <add>, %77, %cst_49 [1] : vector<2x8xf32> to vector<2xf32>
    %79 = vector.shape_cast %78 : vector<2xf32> to vector<2x1xf32>
    %80 = vector.broadcast %79 : vector<2x1xf32> to vector<2x8xf32>
    %81 = arith.divf %77, %80 : vector<2x8xf32>
    %82 = arith.mulf %81, %47 : vector<2x8xf32>
    %cst_50 = arith.constant dense<0.000000e+00> : vector<2xf32>
    %83 = vector.multi_reduction <add>, %82, %cst_50 [1] : vector<2x8xf32> to vector<2xf32>
    %84 = vector.shape_cast %83 : vector<2xf32> to vector<2x1xf32>
    %cst_51 = arith.constant 9.99999996E-13 : f32
    %85 = vector.broadcast %cst_51 : f32 to vector<2x1xf32>
    %86 = arith.addf %84, %85 : vector<2x1xf32>
    %87 = vector.broadcast %86 : vector<2x1xf32> to vector<2x8xf32>
    %88 = arith.divf %82, %87 : vector<2x8xf32>
    %89 = vector.shape_cast %88 : vector<2x8xf32> to vector<2x1x8xf32>
    "tpu.trace_start"() <{level = 10 : i32, message = "bqt,btd->bqd"}> : () -> ()
    %cst_52 = arith.constant dense<0.000000e+00> : vector<2x1x64xf32>
    %90 = tpu.matmul %89, %45, %cst_52 {dimension_numbers = #tpu.dot_dimension_numbers<[2], [1], [1], [2], [0, 0, 0, 1, 1, 2], [0], [0]>} : vector<2x1x8xf32>, vector<2x8x64xf32>, vector<2x1x64xf32> -> vector<2x1x64xf32>
    "tpu.trace_stop"() : () -> ()
    %91 = vector.shape_cast %90 : vector<2x1x64xf32> to vector<2x64xf32>
    %92 = arith.addf %48, %88 : vector<2x8xf32>
    %c0_53 = arith.constant 0 : index
    %c0_54 = arith.constant 0 : index
    %93 = vector.load %arg19[%c0_53, %c0_54] : memref<1x64xf32, #tpu.memory_space<vmem>>, vector<1x64xf32>
    %94 = vector.broadcast %93 : vector<1x64xf32> to vector<2x64xf32>
    %95 = arith.mulf %91, %94 : vector<2x64xf32>
    %cst_55 = arith.constant dense<0.000000e+00> : vector<2xf32>
    %96 = vector.multi_reduction <add>, %95, %cst_55 [1] : vector<2x64xf32> to vector<2xf32>
    %97 = vector.shape_cast %96 : vector<2xf32> to vector<2x1xf32>
    %c0_56 = arith.constant 0 : index
    %c0_57 = arith.constant 0 : index
    %98 = vector.load %arg20[%c0_56, %c0_57] : memref<1x32xf32, #tpu.memory_space<vmem>>, vector<1x32xf32>
    %99 = vector.broadcast %98 : vector<1x32xf32> to vector<2x32xf32>
    %100 = arith.mulf %44, %99 : vector<2x32xf32>
    %cst_58 = arith.constant dense<0.000000e+00> : vector<2xf32>
    %101 = vector.multi_reduction <add>, %100, %cst_58 [1] : vector<2x32xf32> to vector<2xf32>
    %102 = vector.shape_cast %101 : vector<2xf32> to vector<2x1xf32>
    %103 = arith.addf %97, %102 : vector<2x1xf32>
    %c0_59 = arith.constant 0 : index
    %c0_60 = arith.constant 0 : index
    %104 = vector.load %arg21[%c0_59, %c0_60] : memref<1x32xf32, #tpu.memory_space<vmem>>, vector<1x32xf32>
    %105 = vector.broadcast %104 : vector<1x32xf32> to vector<2x32xf32>
    %106 = arith.mulf %42, %105 : vector<2x32xf32>
    %cst_61 = arith.constant dense<0.000000e+00> : vector<2xf32>
    %107 = vector.multi_reduction <add>, %106, %cst_61 [1] : vector<2x32xf32> to vector<2xf32>
    %108 = vector.shape_cast %107 : vector<2xf32> to vector<2x1xf32>
    %109 = arith.addf %103, %108 : vector<2x1xf32>
    %c0_62 = arith.constant 0 : index
    %c0_63 = arith.constant 0 : index
    %110 = vector.load %arg22[%c0_62, %c0_63] : memref<1x16xf32, #tpu.memory_space<vmem>>, vector<1x16xf32>
    %111 = vector.broadcast %110 : vector<1x16xf32> to vector<2x16xf32>
    %112 = arith.mulf %11, %111 : vector<2x16xf32>
    %cst_64 = arith.constant dense<0.000000e+00> : vector<2xf32>
    %113 = vector.multi_reduction <add>, %112, %cst_64 [1] : vector<2x16xf32> to vector<2xf32>
    %114 = vector.shape_cast %113 : vector<2xf32> to vector<2x1xf32>
    %115 = arith.addf %109, %114 : vector<2x1xf32>
    %c0_65 = arith.constant 0 : index
    %c0_66 = arith.constant 0 : index
    %116 = vector.load %arg23[%c0_65, %c0_66] : memref<1x1xf32, #tpu.memory_space<vmem>>, vector<1x1xf32>
    %117 = vector.broadcast %116 : vector<1x1xf32> to vector<2x1xf32>
    %118 = arith.addf %115, %117 : vector<2x1xf32>
    %119 = arith.negf %118 : vector<2x1xf32>
    %120 = math.exp %119 : vector<2x1xf32>
    %cst_67 = arith.constant 1.000000e+00 : f32
    %121 = vector.broadcast %cst_67 : f32 to vector<2x1xf32>
    %122 = arith.addf %121, %120 : vector<2x1xf32>
    %123 = arith.divf %121, %122 : vector<2x1xf32>
    %c0_68 = arith.constant 0 : index
    %c0_69 = arith.constant 0 : index
    %124 = vector.load %arg24[%c0_68, %c0_69] : memref<32x32xf32, #tpu.memory_space<vmem>>, vector<32x32xf32>
    %cst_70 = arith.constant dense<0.000000e+00> : vector<2x32xf32>
    %125 = tpu.matmul %44, %124, %cst_70 {dimension_numbers = #tpu.dot_dimension_numbers<[1], [0], [0], [1], [0, 0, 1, 1], [], []>} : vector<2x32xf32>, vector<32x32xf32>, vector<2x32xf32> -> vector<2x32xf32>
    %c0_71 = arith.constant 0 : index
    %c0_72 = arith.constant 0 : index
    %126 = vector.load %arg25[%c0_71, %c0_72] : memref<64x32xf32, #tpu.memory_space<vmem>>, vector<64x32xf32>
    %cst_73 = arith.constant dense<0.000000e+00> : vector<2x32xf32>
    %127 = tpu.matmul %91, %126, %cst_73 {dimension_numbers = #tpu.dot_dimension_numbers<[1], [0], [0], [1], [0, 0, 1, 1], [], []>} : vector<2x64xf32>, vector<64x32xf32>, vector<2x32xf32> -> vector<2x32xf32>
    %128 = arith.addf %125, %127 : vector<2x32xf32>
    %c0_74 = arith.constant 0 : index
    %c0_75 = arith.constant 0 : index
    %129 = vector.load %arg26[%c0_74, %c0_75] : memref<1x32xf32, #tpu.memory_space<vmem>>, vector<1x32xf32>
    %130 = vector.broadcast %129 : vector<1x32xf32> to vector<2x32xf32>
    %131 = arith.addf %128, %130 : vector<2x32xf32>
    %132 = arith.truncf %131 : vector<2x32xf32> to vector<2x32xbf16>
    %c0_76 = arith.constant 0 : index
    %c0_77 = arith.constant 0 : index
    %133 = vector.load %arg27[%c0_76, %c0_77] : memref<2x32xbf16, #tpu.memory_space<vmem>>, vector<2x32xbf16>
    tpu.vector_store %arg27[%c0_76, %c0_77], %132 {strides = array<i32>} : memref<2x32xbf16, #tpu.memory_space<vmem>>, vector<2x32xbf16>,
    %134 = tpu.concatenate %44, %42, %91, %123 in 1 : vector<2x32xf32>, vector<2x32xf32>, vector<2x64xf32>, vector<2x1xf32> -> vector<2x129xf32>
    %c0_78 = arith.constant 0 : index
    %c0_79 = arith.constant 0 : index
    %135 = vector.load %arg28[%c0_78, %c0_79] : memref<2x129xf32, #tpu.memory_space<vmem>>, vector<2x129xf32>
    tpu.vector_store %arg28[%c0_78, %c0_79], %134 {strides = array<i32>} : memref<2x129xf32, #tpu.memory_space<vmem>>, vector<2x129xf32>,
    %c0_80 = arith.constant 0 : index
    %c0_81 = arith.constant 0 : index
    %136 = vector.load %arg29[%c0_80, %c0_81] : memref<2x8xf32, #tpu.memory_space<vmem>>, vector<2x8xf32>
    tpu.vector_store %arg29[%c0_80, %c0_81], %88 {strides = array<i32>} : memref<2x8xf32, #tpu.memory_space<vmem>>, vector<2x8xf32>,
    %c0_82 = arith.constant 0 : index
    %c0_83 = arith.constant 0 : index
    %137 = vector.load %arg30[%c0_82, %c0_83] : memref<2x8xf32, #tpu.memory_space<vmem>>, vector<2x8xf32>
    tpu.vector_store %arg30[%c0_82, %c0_83], %92 {strides = array<i32>} : memref<2x8xf32, #tpu.memory_space<vmem>>, vector<2x8xf32>,
    return
  }
}

</mosaic_0001>

<llo_original>
// kernel: tpu_custom_call.1
$region0: #{tpu_custom_call.1}
  #allocation0 [shape = 'u32[]', space=smem, size = 0x4, offset = 0x4, fixed_abs, tag = 'smem constant byte address 0x4 - core index']
  #allocation1 [shape = 'u32[144,128]{1,0:T(1,128)}', space=vmem, size = 0x12000, scoped, tag = 'internal scratch']
  #allocation2 [shape = 'f32[1,1]{1,0:T(1,128)S(1)}', space=vmem, size = 0x200, scoped, tag = 'scoped memory for tpu_custom_call.1']
  %s0 = inlined_call_operand.smem [shape: u32[31], index: -1, kind: input, shape index: {}]
  %s1 = sld [smem:[%s0]]
  %s2 = scalar_lea.smem %s0, 1
  %s3 = sld [smem:[%s2]]
  %s4 = scalar_lea.smem %s0, 2
  %s5 = sld [smem:[%s4]]
  %s6 = scalar_lea.smem %s0, 3
  %s7 = sld [smem:[%s6]]
  %s8 = scalar_lea.smem %s0, 4
  %s9 = sld [smem:[%s8]]
  %s10 = scalar_lea.smem %s0, 5
  %s11 = sld [smem:[%s10]]
  %s12 = scalar_lea.smem %s0, 6
  %s13 = sld [smem:[%s12]]
  %s14 = scalar_lea.smem %s0, 7
  %s15 = sld [smem:[%s14]]
  %s16 = scalar_lea.smem %s0, 8
  %s17 = sld [smem:[%s16]]
  %s18 = scalar_lea.smem %s0, 9
  %s19 = sld [smem:[%s18]]
  %s20 = scalar_lea.smem %s0, 10
  %s21 = sld [smem:[%s20]]
  %s22 = scalar_lea.smem %s0, 11
  %s23 = sld [smem:[%s22]]
  %s24 = scalar_lea.smem %s0, 12
  %s25 = sld [smem:[%s24]]
  %s26 = scalar_lea.smem %s0, 13
  %s27 = sld [smem:[%s26]]
  %s28 = scalar_lea.smem %s0, 14
  %s29 = sld [smem:[%s28]]
  %s30 = scalar_lea.smem %s0, 15
  %s31 = sld [smem:[%s30]]
  %s32 = scalar_lea.smem %s0, 16
  %s33 = sld [smem:[%s32]]
  %s34 = scalar_lea.smem %s0, 17
  %s35 = sld [smem:[%s34]]
  %s36 = scalar_lea.smem %s0, 18
  %s37 = sld [smem:[%s36]]
  %s38 = scalar_lea.smem %s0, 19
  %s39 = sld [smem:[%s38]]
  %s40 = scalar_lea.smem %s0, 20
  %s41 = sld [smem:[%s40]]
  %s42 = scalar_lea.smem %s0, 21
  %s43 = sld [smem:[%s42]]
  %s44 = scalar_lea.smem %s0, 22
  %s45 = sld [smem:[%s44]]
  %s46 = scalar_lea.smem %s0, 23
  %s47 = sld [smem:[%s46]]
  %s48 = scalar_lea.smem %s0, 24
  %s49 = sld [smem:[%s48]]
  %s50 = scalar_lea.smem %s0, 25
  %s51 = sld [smem:[%s50]]
  %s52 = scalar_lea.smem %s0, 26
  %s53 = sld [smem:[%s52]]
  %s54 = scalar_lea.smem %s0, 27
  %s55 = sld [smem:[%s54]]
  %s56 = scalar_lea.smem %s0, 28
  %s57 = sld [smem:[%s56]]
  %s58 = scalar_lea.smem %s0, 29
  %s59 = sld [smem:[%s58]]
  %s60 = scalar_lea.smem %s0, 30
  %s61 = sld [smem:[%s60]]
  %62 = xla_tuple %s55, %s57, %s59, %s61
  %s63 = sld [smem:[#allocation0]]
  $region170: #{tpu_custom_call.1} parent=0
    _
  %s65 = ssub.s32 1, %s63
  %s66 = scalar_select 0, %s65, %s63
  %v67 = vstv %s47
  %68 = vst [vmem:[#allocation2] sm:$0x1] %v67
  $region1: #{tpu_custom_call.1} parent=0
    #allocation3 [shape = 'u8[1024]{0}', space=vmem, size = 0x400, scoped, tag = 'input window, operand 1, single buffered']
    #allocation4 [shape = 's32[1]{0}', space=sflag, size = 0x4, scoped, tag = 'scoped memory for tpu_custom_call.1']
    #allocation5 [shape = 's32[1]{0}', space=sflag, size = 0x4, scoped, tag = 'scoped memory for tpu_custom_call.1']
    #allocation6 [shape = 'u8[1024]{0}', space=vmem, size = 0x400, scoped, tag = 'input window, operand 2, single buffered']
    #allocation7 [shape = 's32[1]{0}', space=sflag, size = 0x4, scoped, tag = 'scoped memory for tpu_custom_call.1']
    #allocation8 [shape = 'u8[1024]{0}', space=vmem, size = 0x400, scoped, tag = 'input window, operand 3, single buffered']
    #allocation9 [shape = 'u8[8192]{0}', space=vmem, size = 0x2000, scoped, tag = 'input window, operand 5, single buffered']
    #allocation10 [shape = 's32[1]{0}', space=sflag, size = 0x4, scoped, tag = 'scoped memory for tpu_custom_call.1']
    #allocation11 [shape = 'u8[1024]{0}', space=vmem, size = 0x400, scoped, tag = 'input window, operand 6, single buffered']
    #allocation12 [shape = 'u8[1024]{0}', space=vmem, size = 0x400, scoped, tag = 'input window, operand 7, single buffered']
    #allocation13 [shape = 's32[1]{0}', space=sflag, size = 0x4, scoped, tag = 'scoped memory for tpu_custom_call.1']
    #allocation14 [shape = 'u8[8192]{0}', space=vmem, size = 0x2000, scoped, tag = 'input window, operand 11, single buffered']
    #allocation15 [shape = 'u8[512]{0}', space=vmem, size = 0x400, scoped, tag = 'output window, operand 0, single buffered']
    #allocation16 [shape = 'u8[2048]{0}', space=vmem, size = 0x800, scoped, tag = 'output window, operand 1, single buffered']
    #allocation17 [shape = 's32[1]{0}', space=sflag, size = 0x4, scoped, tag = 'scoped memory for tpu_custom_call.1']
    #allocation18 [shape = 'u8[1024]{0}', space=vmem, size = 0x400, scoped, tag = 'output window, operand 2, single buffered']
    #allocation19 [shape = 'u8[1024]{0}', space=vmem, size = 0x400, scoped, tag = 'output window, operand 3, single buffered']
    #allocation20 [shape = 's32[1]{0}', space=sflag, size = 0x4, scoped, tag = 'scoped memory for tpu_custom_call.1']
    %69 = vsyncpa [#allocation4], 0
    %70 = vsyncpa [#allocation7], 0
    %71 = vsyncpa [#allocation10], 0
    %72 = vsyncpa [#allocation13], 0
    %73 = vsyncpa [#allocation5], 0
    %74 = vsyncpa [#allocation17], 0
    %75 = vsyncpa [#allocation20], 0
    // Predicated region
    $region2: #{tpu_custom_call.1} parent=1 // pred_check
      _
    $region3: #{tpu_custom_call.1} parent=1 // pred_check_branch
      %77 = sbr.rel (0) target = $region5
    $region4: #{tpu_custom_call.1} parent=1 // pred_region
      _
    $region5: #{tpu_custom_call.1} parent=1 // pred_fallthru
      _
    // Predicated region
    $region6: #{tpu_custom_call.1} parent=1 // pred_check
      _
    $region7: #{tpu_custom_call.1} parent=1 // pred_check_branch
      %79 = sbr.rel (0) target = $region9
    $region8: #{tpu_custom_call.1} parent=1 // pred_region
      %s81 = ssub.s32 32, 32
      %82 = vsyncadd [#allocation4], %s81
      %s84 = sshll.u32 [#allocation3], 4
      %s85 = int_to_ptr.vmem [resolvable:$true] %s84
      %87 = dma.hbm_to_vmem [thread:$0]  %s3, 32, %s85, [#allocation4]
    $region9: #{tpu_custom_call.1} parent=1 // pred_fallthru
      _
    // Predicated region
    $region10: #{tpu_custom_call.1} parent=1 // pred_check
      _
    $region11: #{tpu_custom_call.1} parent=1 // pred_check_branch
      %89 = sbr.rel (0) target = $region13
    $region12: #{tpu_custom_call.1} parent=1 // pred_region
      %s91 = ssub.s32 32, 32
      %92 = vsyncadd [#allocation7], %s91
      %s94 = sshll.u32 [#allocation6], 4
      %s95 = int_to_ptr.vmem [resolvable:$true] %s94
      %97 = dma.hbm_to_vmem [thread:$0]  %s5, 32, %s95, [#allocation7]
    $region13: #{tpu_custom_call.1} parent=1 // pred_fallthru
      _
    // Predicated region
    $region14: #{tpu_custom_call.1} parent=1 // pred_check
      _
    $region15: #{tpu_custom_call.1} parent=1 // pred_check_branch
      %99 = sbr.rel (0) target = $region17
    $region16: #{tpu_custom_call.1} parent=1 // pred_region
      %s101 = ssub.s32 32, 32
      %102 = vsyncadd [#allocation7], %s101
      %s104 = sshll.u32 [#allocation8], 4
      %s105 = int_to_ptr.vmem [resolvable:$true] %s104
      %107 = dma.hbm_to_vmem [thread:$0]  %s7, 32, %s105, [#allocation7]
    $region17: #{tpu_custom_call.1} parent=1 // pred_fallthru
      _
    // Predicated region
    $region18: #{tpu_custom_call.1} parent=1 // pred_check
      _
    $region19: #{tpu_custom_call.1} parent=1 // pred_check_branch
      %109 = sbr.rel (0) target = $region21
    $region20: #{tpu_custom_call.1} parent=1 // pred_region
      _
    $region21: #{tpu_custom_call.1} parent=1 // pred_fallthru
      _
    // Predicated region
    $region22: #{tpu_custom_call.1} parent=1 // pred_check
      _
    $region23: #{tpu_custom_call.1} parent=1 // pred_check_branch
      %111 = sbr.rel (0) target = $region25
    $region24: #{tpu_custom_call.1} parent=1 // pred_region
      %s113 = ssub.s32 256, 256
      %114 = vsyncadd [#allocation10], %s113
      %s115 = sshll.u32 [#allocation9], 4
      %s116 = int_to_ptr.vmem [resolvable:$true] %s115
      %121 = dma.hbm_to_vmem [thread:$0]  %s11, 256, %s116, [#allocation10], 128, 128, 8
    $region25: #{tpu_custom_call.1} parent=1 // pred_fallthru
      _
    // Predicated region
    $region26: #{tpu_custom_call.1} parent=1 // pred_check
      _
    $region27: #{tpu_custom_call.1} parent=1 // pred_check_branch
      %123 = sbr.rel (0) target = $region29
    $region28: #{tpu_custom_call.1} parent=1 // pred_region
      %s125 = ssub.s32 32, 32
      %126 = vsyncadd [#allocation10], %s125
      %s128 = sshll.u32 [#allocation11], 4
      %s129 = int_to_ptr.vmem [resolvable:$true] %s128
      %131 = dma.hbm_to_vmem [thread:$0]  %s13, 32, %s129, [#allocation10]
    $region29: #{tpu_custom_call.1} parent=1 // pred_fallthru
      _
    // Predicated region
    $region30: #{tpu_custom_call.1} parent=1 // pred_check
      _
    $region31: #{tpu_custom_call.1} parent=1 // pred_check_branch
      %133 = sbr.rel (0) target = $region33
    $region32: #{tpu_custom_call.1} parent=1 // pred_region
      %s135 = ssub.s32 32, 32
      %136 = vsyncadd [#allocation13], %s135
      %s138 = sshll.u32 [#allocation12], 4
      %s139 = int_to_ptr.vmem [resolvable:$true] %s138
      %141 = dma.hbm_to_vmem [thread:$0]  %s15, 32, %s139, [#allocation13]
    $region33: #{tpu_custom_call.1} parent=1 // pred_fallthru
      _
    // Predicated region
    $region34: #{tpu_custom_call.1} parent=1 // pred_check
      _
    $region35: #{tpu_custom_call.1} parent=1 // pred_check_branch
      %143 = sbr.rel (0) target = $region37
    $region36: #{tpu_custom_call.1} parent=1 // pred_region
      _
    $region37: #{tpu_custom_call.1} parent=1 // pred_fallthru
      _
    // Predicated region
    $region38: #{tpu_custom_call.1} parent=1 // pred_check
      _
    $region39: #{tpu_custom_call.1} parent=1 // pred_check_branch
      %145 = sbr.rel (0) target = $region41
    $region40: #{tpu_custom_call.1} parent=1 // pred_region
      _
    $region41: #{tpu_custom_call.1} parent=1 // pred_fallthru
      _
    // Predicated region
    $region42: #{tpu_custom_call.1} parent=1 // pred_check
      _
    $region43: #{tpu_custom_call.1} parent=1 // pred_check_branch
      %147 = sbr.rel (0) target = $region45
    $region44: #{tpu_custom_call.1} parent=1 // pred_region
      _
    $region45: #{tpu_custom_call.1} parent=1 // pred_fallthru
      _
    // Predicated region
    $region46: #{tpu_custom_call.1} parent=1 // pred_check
      _
    $region47: #{tpu_custom_call.1} parent=1 // pred_check_branch
      %149 = sbr.rel (0) target = $region49
    $region48: #{tpu_custom_call.1} parent=1 // pred_region
      %s151 = ssub.s32 256, 256
      %152 = vsyncadd [#allocation13], %s151
      %s153 = sshll.u32 [#allocation14], 4
      %s154 = int_to_ptr.vmem [resolvable:$true] %s153
      %159 = dma.hbm_to_vmem [thread:$0]  %s23, 256, %s154, [#allocation13], 128, 128, 8
    $region49: #{tpu_custom_call.1} parent=1 // pred_fallthru
      _
    // Predicated region
    $region50: #{tpu_custom_call.1} parent=1 // pred_check
      _
    $region51: #{tpu_custom_call.1} parent=1 // pred_check_branch
      %161 = sbr.rel (0) target = $region53
    $region52: #{tpu_custom_call.1} parent=1 // pred_region
      _
    $region53: #{tpu_custom_call.1} parent=1 // pred_fallthru
      _
    // Predicated region
    $region54: #{tpu_custom_call.1} parent=1 // pred_check
      _
    $region55: #{tpu_custom_call.1} parent=1 // pred_check_branch
      %163 = sbr.rel (0) target = $region57
    $region56: #{tpu_custom_call.1} parent=1 // pred_region
      _
    $region57: #{tpu_custom_call.1} parent=1 // pred_fallthru
      _
    // Predicated region
    $region58: #{tpu_custom_call.1} parent=1 // pred_check
      _
    $region59: #{tpu_custom_call.1} parent=1 // pred_check_branch
      %165 = sbr.rel (0) target = $region61
    $region60: #{tpu_custom_call.1} parent=1 // pred_region
      _
    $region61: #{tpu_custom_call.1} parent=1 // pred_fallthru
      _
    // Predicated region
    $region62: #{tpu_custom_call.1} parent=1 // pred_check
      _
    $region63: #{tpu_custom_call.1} parent=1 // pred_check_branch
      %167 = sbr.rel (0) target = $region65
    $region64: #{tpu_custom_call.1} parent=1 // pred_region
      _
    $region65: #{tpu_custom_call.1} parent=1 // pred_fallthru
      _
    // Predicated region
    $region66: #{tpu_custom_call.1} parent=1 // pred_check
      _
    $region67: #{tpu_custom_call.1} parent=1 // pred_check_branch
      %169 = sbr.rel (0) target = $region69
    $region68: #{tpu_custom_call.1} parent=1 // pred_region
      _
    $region69: #{tpu_custom_call.1} parent=1 // pred_fallthru
      _
    // Predicated region
    $region70: #{tpu_custom_call.1} parent=1 // pred_check
      _
    $region71: #{tpu_custom_call.1} parent=1 // pred_check_branch
      %171 = sbr.rel (0) target = $region73
    $region72: #{tpu_custom_call.1} parent=1 // pred_region
      _
    $region73: #{tpu_custom_call.1} parent=1 // pred_fallthru
      _
    // Predicated region
    $region74: #{tpu_custom_call.1} parent=1 // pred_check
      _
    $region75: #{tpu_custom_call.1} parent=1 // pred_check_branch
      %173 = sbr.rel (0) target = $region77
    $region76: #{tpu_custom_call.1} parent=1 // pred_region
      _
    $region77: #{tpu_custom_call.1} parent=1 // pred_fallthru
      _
    // Predicated region
    $region78: #{tpu_custom_call.1} parent=1 // pred_check
      _
    $region79: #{tpu_custom_call.1} parent=1 // pred_check_branch
      %175 = sbr.rel (0) target = $region81
    $region80: #{tpu_custom_call.1} parent=1 // pred_region
      _
    $region81: #{tpu_custom_call.1} parent=1 // pred_fallthru
      _
    // Predicated region
    $region82: #{tpu_custom_call.1} parent=1 // pred_check
      _
    $region83: #{tpu_custom_call.1} parent=1 // pred_check_branch
      %177 = sbr.rel (0) target = $region85
    $region84: #{tpu_custom_call.1} parent=1 // pred_region
      _
    $region85: #{tpu_custom_call.1} parent=1 // pred_fallthru
      _
    // Predicated region
    $region86: #{tpu_custom_call.1} parent=1 // pred_check
      _
    $region87: #{tpu_custom_call.1} parent=1 // pred_check_branch
      %179 = sbr.rel (0) target = $region89
    $region88: #{tpu_custom_call.1} parent=1 // pred_region
      _
    $region89: #{tpu_custom_call.1} parent=1 // pred_fallthru
      _
    // Predicated region
    $region90: #{tpu_custom_call.1} parent=1 // pred_check
      _
    $region91: #{tpu_custom_call.1} parent=1 // pred_check_branch
      %181 = sbr.rel (0) target = $region93
    $region92: #{tpu_custom_call.1} parent=1 // pred_region
      _
    $region93: #{tpu_custom_call.1} parent=1 // pred_fallthru
      _
    // Predicated region
    $region94: #{tpu_custom_call.1} parent=1 // pred_check
      _
    $region95: #{tpu_custom_call.1} parent=1 // pred_check_branch
      %183 = sbr.rel (0) target = $region97
    $region96: #{tpu_custom_call.1} parent=1 // pred_region
      _
    $region97: #{tpu_custom_call.1} parent=1 // pred_fallthru
      _
    // Predicated region
    $region98: #{tpu_custom_call.1} parent=1 // pred_check
      _
    $region99: #{tpu_custom_call.1} parent=1 // pred_check_branch
      %185 = sbr.rel (0) target = $region101
    $region100: #{tpu_custom_call.1} parent=1 // pred_region
      _
    $region101: #{tpu_custom_call.1} parent=1 // pred_fallthru
      _
    // Predicated region
    $region102: #{tpu_custom_call.1} parent=1 // pred_check
      _
    $region103: #{tpu_custom_call.1} parent=1 // pred_check_branch
      %187 = sbr.rel (0) target = $region105
    $region104: #{tpu_custom_call.1} parent=1 // pred_region
      _
    $region105: #{tpu_custom_call.1} parent=1 // pred_fallthru
      _
    // Predicated region
    $region106: #{tpu_custom_call.1} parent=1 // pred_check
      _
    $region107: #{tpu_custom_call.1} parent=1 // pred_check_branch
      %189 = sbr.rel (0) target = $region109
    $region108: #{tpu_custom_call.1} parent=1 // pred_region
      _
    $region109: #{tpu_custom_call.1} parent=1 // pred_fallthru
      _
    // Predicated region
    $region110: #{tpu_custom_call.1} parent=1 // pred_check
      _
    $region111: #{tpu_custom_call.1} parent=1 // pred_check_branch
      %191 = sbr.rel (0) target = $region113
    $region112: #{tpu_custom_call.1} parent=1 // pred_region
      %192 = dma.done [#allocation4], 32
    $region113: #{tpu_custom_call.1} parent=1 // pred_fallthru
      _
    // Predicated region
    $region114: #{tpu_custom_call.1} parent=1 // pred_check
      _
    $region115: #{tpu_custom_call.1} parent=1 // pred_check_branch
      %194 = sbr.rel (0) target = $region117
    $region116: #{tpu_custom_call.1} parent=1 // pred_region
      %195 = dma.done [#allocation7], 32
    $region117: #{tpu_custom_call.1} parent=1 // pred_fallthru
      _
    // Predicated region
    $region118: #{tpu_custom_call.1} parent=1 // pred_check
      _
    $region119: #{tpu_custom_call.1} parent=1 // pred_check_branch
      %197 = sbr.rel (0) target = $region121
    $region120: #{tpu_custom_call.1} parent=1 // pred_region
      %198 = dma.done [#allocation7], 32
    $region121: #{tpu_custom_call.1} parent=1 // pred_fallthru
      _
    // Predicated region
    $region122: #{tpu_custom_call.1} parent=1 // pred_check
      _
    $region123: #{tpu_custom_call.1} parent=1 // pred_check_branch
      %200 = sbr.rel (0) target = $region125
    $region124: #{tpu_custom_call.1} parent=1 // pred_region
      %201 = dma.done [#allocation10], 256
    $region125: #{tpu_custom_call.1} parent=1 // pred_fallthru
      _
    // Predicated region
    $region126: #{tpu_custom_call.1} parent=1 // pred_check
      _
    $region127: #{tpu_custom_call.1} parent=1 // pred_check_branch
      %203 = sbr.rel (0) target = $region129
    $region128: #{tpu_custom_call.1} parent=1 // pred_region
      %204 = dma.done [#allocation10], 32
    $region129: #{tpu_custom_call.1} parent=1 // pred_fallthru
      _
    // Predicated region
    $region130: #{tpu_custom_call.1} parent=1 // pred_check
      _
    $region131: #{tpu_custom_call.1} parent=1 // pred_check_branch
      %206 = sbr.rel (0) target = $region133
    $region132: #{tpu_custom_call.1} parent=1 // pred_region
      %207 = dma.done [#allocation13], 32
    $region133: #{tpu_custom_call.1} parent=1 // pred_fallthru
      _
    // Predicated region
    $region134: #{tpu_custom_call.1} parent=1 // pred_check
      _
    $region135: #{tpu_custom_call.1} parent=1 // pred_check_branch
      %209 = sbr.rel (0) target = $region137
    $region136: #{tpu_custom_call.1} parent=1 // pred_region
      %210 = dma.done [#allocation13], 256
    $region137: #{tpu_custom_call.1} parent=1 // pred_fallthru
      _
    %v211 = vld [vmem:[%s1] sm:$0x3]
    %v212 = vld [vmem:[#allocation3] sm:$0x3]
    %v213 = vld [vmem:[#allocation6] sm:$0x3]
    %v214 = vld [vmem:[#allocation8] sm:$0x3]
    %v215 = vld [vmem:[%s17] sm:$0xff]
    %v216 = vld [vmem:[%s17 + $0x8] sm:$0xff]
    %v217 = vld [vmem:[%s17 + $0x10] sm:$0xff]
    %v218 = vld [vmem:[%s17 + $0x18] sm:$0xff]
    %v219 = vld [vmem:[%s17 + $0x20] sm:$0xff]
    %v220 = vld [vmem:[%s17 + $0x28] sm:$0xff]
    %v221 = vld [vmem:[%s17 + $0x30] sm:$0xff]
    %v222 = vld [vmem:[%s17 + $0x38] sm:$0xff]
    %v223 = vld [vmem:[%s19] sm:$0xff]
    %v224 = vld [vmem:[%s19 + $0x8] sm:$0xff]
    %vm225 = vcmask 130048
    %v227 = vsel %vm225, %v211, 0
    %229 = vmatprep.subr.mxu0 0.0
    %230 = vmatpush1.msra.mxu0 %v223
    %231 = vmatprep.subr.mxu0 0.0
    %232 = vmatpush1.msra.mxu0 %v224
    %233 = vmatprep.subr.mxu0 0.0
    %234 = vmatpush1.msra.mxu0 0.0
    %235 = vmatprep.subr.mxu0 0.0
    %236 = vmatpush1.msra.mxu0 0.0
    %237 = vmatprep.subr.mxu0 0.0
    %238 = vmatpush1.msra.mxu0 0.0
    %239 = vmatprep.subr.mxu0 0.0
    %240 = vmatpush1.msra.mxu0 0.0
    %241 = vmatprep.subr.mxu0 0.0
    %242 = vmatpush1.msra.mxu0 0.0
    %243 = vmatprep.subr.mxu0 0.0
    %244 = vmatpush1.msra.mxu0 0.0
    %245 = vmatprep.subr.mxu0 0.0
    %246 = vmatpush1.msra.mxu0 0.0
    %247 = vmatprep.subr.mxu0 0.0
    %248 = vmatpush1.msra.mxu0 0.0
    %249 = vmatprep.subr.mxu0 0.0
    %250 = vmatpush1.msra.mxu0 0.0
    %251 = vmatprep.subr.mxu0 0.0
    %252 = vmatpush1.msra.mxu0 0.0
    %253 = vmatprep.subr.mxu0 0.0
    %254 = vmatpush1.msra.mxu0 0.0
    %255 = vmatprep.subr.mxu0 0.0
    %256 = vmatpush1.msra.mxu0 0.0
    %257 = vmatprep.subr.mxu0 0.0
    %258 = vmatpush1.msra.mxu0 0.0
    %259 = vmatprep.subr.mxu0 0.0
    %260 = vmatpush1.msra.mxu0 0.0
    %261 = vmatprep.subr.mxu0 0.0
    %262 = vmatpush1.msra.mxu0 0.0
    %263 = vmatprep.subr.mxu0 0.0
    %264 = vmatpush1.msra.mxu0 0.0
    %265 = vmatprep.subr.mxu0 0.0
    %266 = vmatpush1.msra.mxu0 0.0
    %267 = vmatprep.subr.mxu0 0.0
    %268 = vmatpush1.msra.mxu0 0.0
    %269 = vmatprep.subr.mxu0 0.0
    %270 = vmatpush1.msra.mxu0 0.0
    %271 = vmatprep.subr.mxu0 0.0
    %272 = vmatpush1.msra.mxu0 0.0
    %273 = vmatprep.subr.mxu0 0.0
    %274 = vmatpush1.msra.mxu0 0.0
    %275 = vmatprep.subr.mxu0 0.0
    %276 = vmatpush1.msra.mxu0 0.0
    %277 = vmatprep.subr.mxu0 0.0
    %278 = vmatpush1.msra.mxu0 0.0
    %279 = vmatprep.subr.mxu0 0.0
    %280 = vmatpush1.msra.mxu0 0.0
    %281 = vmatprep.subr.mxu0 0.0
    %282 = vmatpush1.msra.mxu0 0.0
    %283 = vmatprep.subr.mxu0 0.0
    %284 = vmatpush1.msra.mxu0 0.0
    %285 = vmatprep.subr.mxu0 0.0
    %286 = vmatpush1.msra.mxu0 0.0
    %287 = vmatprep.subr.mxu0 0.0
    %288 = vmatpush1.msra.mxu0 0.0
    %289 = vmatprep.subr.mxu0 0.0
    %290 = vmatpush1.msra.mxu0 0.0
    %291 = vmatprep.subr.mxu0 0.0
    %292 = vmatpush1.msra.mxu0 0.0
    %293 = vmatprep.mubr.f32.mxu0 0.0
    %294 = vmatmul.mubr.f32.gmra.mrb[0].mxu0 %v227
    %v295 = vpop.f32.mrb[0].mxu0
    %v296 = vadd.f32 0.0, %v295
    %v297 = vpop.f32.mrb[0].mxu0
    %298 = vdwg.mxu0
    %vm299 = vcmask 523264
    %v301 = vsel %vm299, %v212, 0
    %303 = vmatprep.subr.mxu0 0.0
    %304 = vmatpush1.msra.mxu0 %v215
    %305 = vmatprep.subr.mxu0 0.0
    %306 = vmatpush1.msra.mxu0 %v216
    %307 = vmatprep.subr.mxu0 0.0
    %308 = vmatpush1.msra.mxu0 %v217
    %309 = vmatprep.subr.mxu0 0.0
    %310 = vmatpush1.msra.mxu0 %v218
    %311 = vmatprep.subr.mxu0 0.0
    %312 = vmatpush1.msra.mxu0 %v219
    %313 = vmatprep.subr.mxu0 0.0
    %314 = vmatpush1.msra.mxu0 %v220
    %315 = vmatprep.subr.mxu0 0.0
    %316 = vmatpush1.msra.mxu0 %v221
    %317 = vmatprep.subr.mxu0 0.0
    %318 = vmatpush1.msra.mxu0 %v222
    %319 = vmatprep.subr.mxu0 0.0
    %320 = vmatpush1.msra.mxu0 0.0
    %321 = vmatprep.subr.mxu0 0.0
    %322 = vmatpush1.msra.mxu0 0.0
    %323 = vmatprep.subr.mxu0 0.0
    %324 = vmatpush1.msra.mxu0 0.0
    %325 = vmatprep.subr.mxu0 0.0
    %326 = vmatpush1.msra.mxu0 0.0
    %327 = vmatprep.subr.mxu0 0.0
    %328 = vmatpush1.msra.mxu0 0.0
    %329 = vmatprep.subr.mxu0 0.0
    %330 = vmatpush1.msra.mxu0 0.0
    %331 = vmatprep.subr.mxu0 0.0
    %332 = vmatpush1.msra.mxu0 0.0
    %333 = vmatprep.subr.mxu0 0.0
    %334 = vmatpush1.msra.mxu0 0.0
    %335 = vmatprep.subr.mxu0 0.0
    %336 = vmatpush1.msra.mxu0 0.0
    %337 = vmatprep.subr.mxu0 0.0
    %338 = vmatpush1.msra.mxu0 0.0
    %339 = vmatprep.subr.mxu0 0.0
    %340 = vmatpush1.msra.mxu0 0.0
    %341 = vmatprep.subr.mxu0 0.0
    %342 = vmatpush1.msra.mxu0 0.0
    %343 = vmatprep.subr.mxu0 0.0
    %344 = vmatpush1.msra.mxu0 0.0
    %345 = vmatprep.subr.mxu0 0.0
    %346 = vmatpush1.msra.mxu0 0.0
    %347 = vmatprep.subr.mxu0 0.0
    %348 = vmatpush1.msra.mxu0 0.0
    %349 = vmatprep.subr.mxu0 0.0
    %350 = vmatpush1.msra.mxu0 0.0
    %351 = vmatprep.subr.mxu0 0.0
    %352 = vmatpush1.msra.mxu0 0.0
    %353 = vmatprep.subr.mxu0 0.0
    %354 = vmatpush1.msra.mxu0 0.0
    %355 = vmatprep.subr.mxu0 0.0
    %356 = vmatpush1.msra.mxu0 0.0
    %357 = vmatprep.subr.mxu0 0.0
    %358 = vmatpush1.msra.mxu0 0.0
    %359 = vmatprep.subr.mxu0 0.0
    %360 = vmatpush1.msra.mxu0 0.0
    %361 = vmatprep.subr.mxu0 0.0
    %362 = vmatpush1.msra.mxu0 0.0
    %363 = vmatprep.subr.mxu0 0.0
    %364 = vmatpush1.msra.mxu0 0.0
    %365 = vmatprep.subr.mxu0 0.0
    %366 = vmatpush1.msra.mxu0 0.0
    %367 = vmatprep.mubr.f32.mxu0 0.0
    %368 = vmatmul.mubr.f32.gmra.mrb[0].mxu0 %v301
    %v369 = vpop.f32.mrb[0].mxu0
    %v370 = vadd.f32 %v296, %v369
    %v371 = vpop.f32.mrb[0].mxu0
    %372 = vdwg.mxu0
    %v373 = vld [vmem:[%s21] sm:$0x1]
    %v375 = vlaneseq
    %v376 = vshrl.u32 %v375, 7
    %v377 = vsub.s32 0, %v376
    %v378 = vrot.slane %v373, %v377
    %v380 = vadd.f32 %v370, %v378
    %v381 = vld [vmem:[#allocation14] sm:$0xff]
    %v382 = vld [vmem:[#allocation14 + $0x8] sm:$0xff]
    %v383 = vld [vmem:[%s25] sm:$0xff]
    %v384 = vld [vmem:[%s25 + $0x8] sm:$0xff]
    %v385 = vld [vmem:[%s25 + $0x10] sm:$0xff]
    %v386 = vld [vmem:[%s25 + $0x18] sm:$0xff]
    %vm387 = vcmask 261120
    %v389 = vsel %vm387, %v213, 0
    %391 = vmatprep.subr.mxu0 0.0
    %392 = vmatpush1.msra.mxu0 %v383
    %393 = vmatprep.subr.mxu0 0.0
    %394 = vmatpush1.msra.mxu0 %v384
    %395 = vmatprep.subr.mxu0 0.0
    %396 = vmatpush1.msra.mxu0 %v385
    %397 = vmatprep.subr.mxu0 0.0
    %398 = vmatpush1.msra.mxu0 %v386
    %399 = vmatprep.subr.mxu0 0.0
    %400 = vmatpush1.msra.mxu0 0.0
    %401 = vmatprep.subr.mxu0 0.0
    %402 = vmatpush1.msra.mxu0 0.0
    %403 = vmatprep.subr.mxu0 0.0
    %404 = vmatpush1.msra.mxu0 0.0
    %405 = vmatprep.subr.mxu0 0.0
    %406 = vmatpush1.msra.mxu0 0.0
    %407 = vmatprep.subr.mxu0 0.0
    %408 = vmatpush1.msra.mxu0 0.0
    %409 = vmatprep.subr.mxu0 0.0
    %410 = vmatpush1.msra.mxu0 0.0
    %411 = vmatprep.subr.mxu0 0.0
    %412 = vmatpush1.msra.mxu0 0.0
    %413 = vmatprep.subr.mxu0 0.0
    %414 = vmatpush1.msra.mxu0 0.0
    %415 = vmatprep.subr.mxu0 0.0
    %416 = vmatpush1.msra.mxu0 0.0
    %417 = vmatprep.subr.mxu0 0.0
    %418 = vmatpush1.msra.mxu0 0.0
    %419 = vmatprep.subr.mxu0 0.0
    %420 = vmatpush1.msra.mxu0 0.0
    %421 = vmatprep.subr.mxu0 0.0
    %422 = vmatpush1.msra.mxu0 0.0
    %423 = vmatprep.subr.mxu0 0.0
    %424 = vmatpush1.msra.mxu0 0.0
    %425 = vmatprep.subr.mxu0 0.0
    %426 = vmatpush1.msra.mxu0 0.0
    %427 = vmatprep.subr.mxu0 0.0
    %428 = vmatpush1.msra.mxu0 0.0
    %429 = vmatprep.subr.mxu0 0.0
    %430 = vmatpush1.msra.mxu0 0.0
    %431 = vmatprep.subr.mxu0 0.0
    %432 = vmatpush1.msra.mxu0 0.0
    %433 = vmatprep.subr.mxu0 0.0
    %434 = vmatpush1.msra.mxu0 0.0
    %435 = vmatprep.subr.mxu0 0.0
    %436 = vmatpush1.msra.mxu0 0.0
    %437 = vmatprep.subr.mxu0 0.0
    %438 = vmatpush1.msra.mxu0 0.0
    %439 = vmatprep.subr.mxu0 0.0
    %440 = vmatpush1.msra.mxu0 0.0
    %441 = vmatprep.subr.mxu0 0.0
    %442 = vmatpush1.msra.mxu0 0.0
    %443 = vmatprep.subr.mxu0 0.0
    %444 = vmatpush1.msra.mxu0 0.0
    %445 = vmatprep.subr.mxu0 0.0
    %446 = vmatpush1.msra.mxu0 0.0
    %447 = vmatprep.subr.mxu0 0.0
    %448 = vmatpush1.msra.mxu0 0.0
    %449 = vmatprep.subr.mxu0 0.0
    %450 = vmatpush1.msra.mxu0 0.0
    %451 = vmatprep.subr.mxu0 0.0
    %452 = vmatpush1.msra.mxu0 0.0
    %453 = vmatprep.subr.mxu0 0.0
    %454 = vmatpush1.msra.mxu0 0.0
    %455 = vmatprep.mubr.f32.mxu0 0.0
    %456 = vmatmul.mubr.f32.gmra.mrb[0].mxu0 %v389
    %v457 = vpop.f32.mrb[0].mxu0
    %v458 = vadd.f32 0.0, %v457
    %v459 = vpop.f32.mrb[0].mxu0
    %460 = vdwg.mxu0
    %v462 = vsel %vm225, %v380, 0
    %464 = vmatprep.subr.mxu0 0.0
    %465 = vmatpush1.msra.mxu0 %v381
    %466 = vmatprep.subr.mxu0 0.0
    %467 = vmatpush1.msra.mxu0 %v382
    %468 = vmatprep.subr.mxu0 0.0
    %469 = vmatpush1.msra.mxu0 0.0
    %470 = vmatprep.subr.mxu0 0.0
    %471 = vmatpush1.msra.mxu0 0.0
    %472 = vmatprep.subr.mxu0 0.0
    %473 = vmatpush1.msra.mxu0 0.0
    %474 = vmatprep.subr.mxu0 0.0
    %475 = vmatpush1.msra.mxu0 0.0
    %476 = vmatprep.subr.mxu0 0.0
    %477 = vmatpush1.msra.mxu0 0.0
    %478 = vmatprep.subr.mxu0 0.0
    %479 = vmatpush1.msra.mxu0 0.0
    %480 = vmatprep.subr.mxu0 0.0
    %481 = vmatpush1.msra.mxu0 0.0
    %482 = vmatprep.subr.mxu0 0.0
    %483 = vmatpush1.msra.mxu0 0.0
    %484 = vmatprep.subr.mxu0 0.0
    %485 = vmatpush1.msra.mxu0 0.0
    %486 = vmatprep.subr.mxu0 0.0
    %487 = vmatpush1.msra.mxu0 0.0
    %488 = vmatprep.subr.mxu0 0.0
    %489 = vmatpush1.msra.mxu0 0.0
    %490 = vmatprep.subr.mxu0 0.0
    %491 = vmatpush1.msra.mxu0 0.0
    %492 = vmatprep.subr.mxu0 0.0
    %493 = vmatpush1.msra.mxu0 0.0
    %494 = vmatprep.subr.mxu0 0.0
    %495 = vmatpush1.msra.mxu0 0.0
    %496 = vmatprep.subr.mxu0 0.0
    %497 = vmatpush1.msra.mxu0 0.0
    %498 = vmatprep.subr.mxu0 0.0
    %499 = vmatpush1.msra.mxu0 0.0
    %500 = vmatprep.subr.mxu0 0.0
    %501 = vmatpush1.msra.mxu0 0.0
    %502 = vmatprep.subr.mxu0 0.0
    %503 = vmatpush1.msra.mxu0 0.0
    %504 = vmatprep.subr.mxu0 0.0
    %505 = vmatpush1.msra.mxu0 0.0
    %506 = vmatprep.subr.mxu0 0.0
    %507 = vmatpush1.msra.mxu0 0.0
    %508 = vmatprep.subr.mxu0 0.0
    %509 = vmatpush1.msra.mxu0 0.0
    %510 = vmatprep.subr.mxu0 0.0
    %511 = vmatpush1.msra.mxu0 0.0
    %512 = vmatprep.subr.mxu0 0.0
    %513 = vmatpush1.msra.mxu0 0.0
    %514 = vmatprep.subr.mxu0 0.0
    %515 = vmatpush1.msra.mxu0 0.0
    %516 = vmatprep.subr.mxu0 0.0
    %517 = vmatpush1.msra.mxu0 0.0
    %518 = vmatprep.subr.mxu0 0.0
    %519 = vmatpush1.msra.mxu0 0.0
    %520 = vmatprep.subr.mxu0 0.0
    %521 = vmatpush1.msra.mxu0 0.0
    %522 = vmatprep.subr.mxu0 0.0
    %523 = vmatpush1.msra.mxu0 0.0
    %524 = vmatprep.subr.mxu0 0.0
    %525 = vmatpush1.msra.mxu0 0.0
    %526 = vmatprep.subr.mxu0 0.0
    %527 = vmatpush1.msra.mxu0 0.0
    %528 = vmatprep.mubr.f32.mxu0 0.0
    %529 = vmatmul.mubr.f32.gmra.mrb[0].mxu0 %v462
    %v530 = vpop.f32.mrb[0].mxu0
    %v531 = vadd.f32 %v458, %v530
    %v532 = vpop.f32.mrb[0].mxu0
    %533 = vdwg.mxu0
    %v534 = vld [vmem:[%s27] sm:$0x1]
    %v536 = vlaneseq
    %v537 = vshrl.u32 %v536, 7
    %v538 = vsub.s32 0, %v537
    %v539 = vrot.slane %v534, %v538
    %v541 = vadd.f32 %v531, %v539
    %v542 = vxor.u32 %v541, 2147483648
    %v543 = vmul.f32 %v542, 1.442695
    %v544 = vpow.pop %v543
    %v545 = vadd.f32 %v544, 1.0
    %v546 = vrcp.pop %v545
    %v547 = vmul.f32 1.0, %v546
    %v548 = vtanh.pop %v541
    %550 = vrot.lane.b32.xlu0 %v214, 32
    %v551 = vpop.permute.xlu0 %550
    %v553 = vmul.f32 %v547, %v551
    %555 = vrot.lane.b32.xlu0 %v548, 64
    %v556 = vpop.permute.xlu0 %555
    %v558 = vmul.f32 %v547, %v556
    %560 = vrot.lane.b32.xlu0 %v558, 32
    %v561 = vpop.permute.xlu0 %560
    %v563 = vadd.f32 %v553, %v561
    %v564 = vtanh.pop %v563
    %566 = vrot.lane.b32.xlu0 %v564, 64
    %v567 = vpop.permute.xlu0 %566
    %v569 = vmul.f32 %v547, %v567
    %v570 = vld [vmem:[%s9] sm:$0xff]
    %v571 = vld [vmem:[%s9 + $0x8] sm:$0xff]
    %v572 = vld [vmem:[#allocation9] sm:$0xff]
    %v573 = vld [vmem:[#allocation9 + $0x8] sm:$0xff]
    %v574 = vld [vmem:[#allocation11] sm:$0x3]
    %v575 = vld [vmem:[#allocation12] sm:$0x3]
    %v576 = vld [vmem:[%s29] sm:$0xff]
    %v577 = vld [vmem:[%s29 + $0x8] sm:$0xff]
    %v578 = vld [vmem:[%s29 + $0x10] sm:$0xff]
    %v579 = vld [vmem:[%s29 + $0x18] sm:$0xff]
    %v580 = vld [vmem:[%s31] sm:$0xff]
    %v581 = vld [vmem:[%s31 + $0x8] sm:$0xff]
    %v582 = vld [vmem:[%s31 + $0x10] sm:$0xff]
    %v583 = vld [vmem:[%s31 + $0x18] sm:$0xff]
    %v584 = vld [vmem:[%s33] sm:$0x1]
    %v585 = vld [vmem:[%s35] sm:$0x1]
    %v586 = vld [vmem:[%s37] sm:$0x1]
    %588 = vrot.lane.b32.xlu0 %v563, 96
    %v589 = vpop.permute.xlu0 %588
    %v590 = vsel %vm387, %v589, 0
    %592 = vmatprep.subr.mxu0 0.0
    %593 = vmatpush1.msra.mxu0 %v580
    %594 = vmatprep.subr.mxu0 0.0
    %595 = vmatpush1.msra.mxu0 %v581
    %596 = vmatprep.subr.mxu0 0.0
    %597 = vmatpush1.msra.mxu0 %v582
    %598 = vmatprep.subr.mxu0 0.0
    %599 = vmatpush1.msra.mxu0 %v583
    %600 = vmatprep.subr.mxu0 0.0
    %601 = vmatpush1.msra.mxu0 0.0
    %602 = vmatprep.subr.mxu0 0.0
    %603 = vmatpush1.msra.mxu0 0.0
    %604 = vmatprep.subr.mxu0 0.0
    %605 = vmatpush1.msra.mxu0 0.0
    %606 = vmatprep.subr.mxu0 0.0
    %607 = vmatpush1.msra.mxu0 0.0
    %608 = vmatprep.subr.mxu0 0.0
    %609 = vmatpush1.msra.mxu0 0.0
    %610 = vmatprep.subr.mxu0 0.0
    %611 = vmatpush1.msra.mxu0 0.0
    %612 = vmatprep.subr.mxu0 0.0
    %613 = vmatpush1.msra.mxu0 0.0
    %614 = vmatprep.subr.mxu0 0.0
    %615 = vmatpush1.msra.mxu0 0.0
    %616 = vmatprep.subr.mxu0 0.0
    %617 = vmatpush1.msra.mxu0 0.0
    %618 = vmatprep.subr.mxu0 0.0
    %619 = vmatpush1.msra.mxu0 0.0
    %620 = vmatprep.subr.mxu0 0.0
    %621 = vmatpush1.msra.mxu0 0.0
    %622 = vmatprep.subr.mxu0 0.0
    %623 = vmatpush1.msra.mxu0 0.0
    %624 = vmatprep.subr.mxu0 0.0
    %625 = vmatpush1.msra.mxu0 0.0
    %626 = vmatprep.subr.mxu0 0.0
    %627 = vmatpush1.msra.mxu0 0.0
    %628 = vmatprep.subr.mxu0 0.0
    %629 = vmatpush1.msra.mxu0 0.0
    %630 = vmatprep.subr.mxu0 0.0
    %631 = vmatpush1.msra.mxu0 0.0
    %632 = vmatprep.subr.mxu0 0.0
    %633 = vmatpush1.msra.mxu0 0.0
    %634 = vmatprep.subr.mxu0 0.0
    %635 = vmatpush1.msra.mxu0 0.0
    %636 = vmatprep.subr.mxu0 0.0
    %637 = vmatpush1.msra.mxu0 0.0
    %638 = vmatprep.subr.mxu0 0.0
    %639 = vmatpush1.msra.mxu0 0.0
    %640 = vmatprep.subr.mxu0 0.0
    %641 = vmatpush1.msra.mxu0 0.0
    %642 = vmatprep.subr.mxu0 0.0
    %643 = vmatpush1.msra.mxu0 0.0
    %644 = vmatprep.subr.mxu0 0.0
    %645 = vmatpush1.msra.mxu0 0.0
    %646 = vmatprep.subr.mxu0 0.0
    %647 = vmatpush1.msra.mxu0 0.0
    %648 = vmatprep.subr.mxu0 0.0
    %649 = vmatpush1.msra.mxu0 0.0
    %650 = vmatprep.subr.mxu0 0.0
    %651 = vmatpush1.msra.mxu0 0.0
    %652 = vmatprep.subr.mxu0 0.0
    %653 = vmatpush1.msra.mxu0 0.0
    %654 = vmatprep.subr.mxu0 0.0
    %655 = vmatpush1.msra.mxu0 0.0
    %656 = vmatprep.mubr.f32.mxu0 0.0
    %657 = vmatmul.mubr.f32.gmra.mrb[0].mxu0 %v590
    %v658 = vpop.f32.mrb[0].mxu0
    %v659 = vadd.f32 0.0, %v658
    %v660 = vpop.f32.mrb[0].mxu0
    %661 = vdwg.mxu0
    %663 = vrot.lane.b32.xlu0 %v569, 32
    %v664 = vpop.permute.xlu0 %663
    %v665 = vsel %vm387, %v664, 0
    %667 = vmatprep.subr.mxu0 0.0
    %668 = vmatpush1.msra.mxu0 %v576
    %669 = vmatprep.subr.mxu0 0.0
    %670 = vmatpush1.msra.mxu0 %v577
    %671 = vmatprep.subr.mxu0 0.0
    %672 = vmatpush1.msra.mxu0 %v578
    %673 = vmatprep.subr.mxu0 0.0
    %674 = vmatpush1.msra.mxu0 %v579
    %675 = vmatprep.subr.mxu0 0.0
    %676 = vmatpush1.msra.mxu0 0.0
    %677 = vmatprep.subr.mxu0 0.0
    %678 = vmatpush1.msra.mxu0 0.0
    %679 = vmatprep.subr.mxu0 0.0
    %680 = vmatpush1.msra.mxu0 0.0
    %681 = vmatprep.subr.mxu0 0.0
    %682 = vmatpush1.msra.mxu0 0.0
    %683 = vmatprep.subr.mxu0 0.0
    %684 = vmatpush1.msra.mxu0 0.0
    %685 = vmatprep.subr.mxu0 0.0
    %686 = vmatpush1.msra.mxu0 0.0
    %687 = vmatprep.subr.mxu0 0.0
    %688 = vmatpush1.msra.mxu0 0.0
    %689 = vmatprep.subr.mxu0 0.0
    %690 = vmatpush1.msra.mxu0 0.0
    %691 = vmatprep.subr.mxu0 0.0
    %692 = vmatpush1.msra.mxu0 0.0
    %693 = vmatprep.subr.mxu0 0.0
    %694 = vmatpush1.msra.mxu0 0.0
    %695 = vmatprep.subr.mxu0 0.0
    %696 = vmatpush1.msra.mxu0 0.0
    %697 = vmatprep.subr.mxu0 0.0
    %698 = vmatpush1.msra.mxu0 0.0
    %699 = vmatprep.subr.mxu0 0.0
    %700 = vmatpush1.msra.mxu0 0.0
    %701 = vmatprep.subr.mxu0 0.0
    %702 = vmatpush1.msra.mxu0 0.0
    %703 = vmatprep.subr.mxu0 0.0
    %704 = vmatpush1.msra.mxu0 0.0
    %705 = vmatprep.subr.mxu0 0.0
    %706 = vmatpush1.msra.mxu0 0.0
    %707 = vmatprep.subr.mxu0 0.0
    %708 = vmatpush1.msra.mxu0 0.0
    %709 = vmatprep.subr.mxu0 0.0
    %710 = vmatpush1.msra.mxu0 0.0
    %711 = vmatprep.subr.mxu0 0.0
    %712 = vmatpush1.msra.mxu0 0.0
    %713 = vmatprep.subr.mxu0 0.0
    %714 = vmatpush1.msra.mxu0 0.0
    %715 = vmatprep.subr.mxu0 0.0
    %716 = vmatpush1.msra.mxu0 0.0
    %717 = vmatprep.subr.mxu0 0.0
    %718 = vmatpush1.msra.mxu0 0.0
    %719 = vmatprep.subr.mxu0 0.0
    %720 = vmatpush1.msra.mxu0 0.0
    %721 = vmatprep.subr.mxu0 0.0
    %722 = vmatpush1.msra.mxu0 0.0
    %723 = vmatprep.subr.mxu0 0.0
    %724 = vmatpush1.msra.mxu0 0.0
    %725 = vmatprep.subr.mxu0 0.0
    %726 = vmatpush1.msra.mxu0 0.0
    %727 = vmatprep.subr.mxu0 0.0
    %728 = vmatpush1.msra.mxu0 0.0
    %729 = vmatprep.subr.mxu0 0.0
    %730 = vmatpush1.msra.mxu0 0.0
    %731 = vmatprep.mubr.f32.mxu0 0.0
    %732 = vmatmul.mubr.f32.gmra.mrb[0].mxu0 %v665
    %v733 = vpop.f32.mrb[0].mxu0
    %v734 = vadd.f32 %v659, %v733
    %v735 = vpop.f32.mrb[0].mxu0
    %736 = vdwg.mxu0
    %v738 = vlaneseq
    %v739 = vshrl.u32 %v738, 7
    %v740 = vsub.s32 0, %v739
    %v741 = vrot.slane %v584, %v740
    %v743 = vadd.f32 %v734, %v741
    %v746 = vunpack.c.l.s4 1966171168
    %v747 = vunpack.c.0.s8 %v746
    %v748 = vlaneseq
    %v749 = vshrl.u32 %v748, 7
    %v750 = vsub.s32 %v747, %v749
    %v751 = vrot.slane %v743, %v750
    %v752 = vcombine.high %v751, %v751
    %v754 = vunpack.c.l.s4 1966171168
    %v755 = vunpack.c.0.s8 %v754
    %v756 = vlaneseq
    %v757 = vshrl.u32 %v756, 7
    %v758 = vsub.s32 %v755, %v757
    %v759 = vrot.slane %v751, %v758
    %v761 = vunpack.c.l.s4 1966171168
    %v762 = vunpack.c.0.s8 %v761
    %v763 = vlaneseq
    %v764 = vshrl.u32 %v763, 7
    %v765 = vsub.s32 %v762, %v764
    %v766 = vrot.slane %v752, %v765
    %v767 = vlaneseq
    %v768 = vshrl.u32 %v767, 7
    %v769 = vsub.s32 0, %v768
    %v770 = vrot.slane %v759, %v769
    %v771 = vlaneseq
    %v772 = vshrl.u32 %v771, 7
    %v773 = vsub.s32 0, %v772
    %v774 = vrot.slane %v766, %v773
    %v777 = vadd.f32 %v572, %v770
    %v778 = vadd.f32 %v573, %v774
    %v779 = vlaneseq
    %v780 = vshrl.u32 %v779, 7
    %v781 = vsub.s32 0, %v780
    %v782 = vrot.slane %v575, %v781
    %784 = vbcast.lane.b32.xlu0 %v782, 256
    %v785 = vpop.permute.xlu0 %784
    %v786 = vlaneseq
    %v787 = vshrl.u32 %v786, 7
    %v788 = vsub.s32 1, %v787
    %v789 = vrot.slane %v575, %v788
    %791 = vbcast.lane.b32.xlu0 %v789, 256
    %v792 = vpop.permute.xlu0 %791
    %v794 = vlaneseq
    %v795 = vshrl.u32 %v794, 7
    %v796 = vsub.s32 0, %v795
    %v797 = vrot.slane %v585, %v796
    %v799 = vmul.f32 %v785, %v797
    %v800 = vmul.f32 %v792, %v797
    %v801 = vadd.f32 %v777, %v799
    %v802 = vadd.f32 %v778, %v800
    %v803 = vtanh.pop %v801
    %v804 = vtanh.pop %v802
    %v806 = vlaneseq
    %v807 = vshrl.u32 %v806, 7
    %v808 = vsub.s32 0, %v807
    %v809 = vrot.slane %v586, %v808
    %v811 = vmul.f32 %v803, %v809
    %v812 = vmul.f32 %v804, %v809
    %v813 = vsel %vm299, %v811, 0.0
    %814 = vadd.xlane.f32.xlu0 %v813
    %v815 = vpop.xlane.xlu0 %814
    %v816 = vsel %vm299, %v812, 0.0
    %817 = vadd.xlane.f32.xlu0 %v816
    %v818 = vpop.xlane.xlu0 %817
    %v821 = vlaneseq
    %v822 = vand.u32 %v821, 127
    %v823 = vlaneseq
    %v824 = vshrl.u32 %v823, 7
    %v825 = vsub.s32 %v822, %v824
    %v826 = vrot.slane %v815, %v825
    %v827 = vlaneseq
    %v828 = vshrl.u32 %v827, 7
    %v829 = vsub.s32 %v822, %v828
    %v830 = vrot.slane %v818, %v829
    %vm831 = vcmask 1041409
    %v832 = vsel %vm831, %v830, %v826
    %vm834 = vcmask 58368
    %v835 = vsel %vm834, %v832, -inf
    %836 = vmax.xlane.f32.xlu0 %v835
    %v837 = vpop.xlane.xlu0 %836
    %v839 = vlaneseq
    %v840 = vshrl.u32 %v839, 7
    %v841 = vsub.s32 0, %v840
    %v842 = vrot.slane %v837, %v841
    %v843 = vlaneseq
    %v844 = vshrl.u32 %v843, 7
    %v845 = vsub.s32 1, %v844
    %v846 = vrot.slane %v837, %v845
    %v849 = vsub.f32 %v815, %v842
    %v850 = vsub.f32 %v818, %v846
    %v851 = vmul.f32 %v849, 1.442695
    %v852 = vpow.pop %v851
    %v853 = vmul.f32 %v850, 1.442695
    %v854 = vpow.pop %v853
    %857 = vset.pattern.permute.xlu0 0
    %858 = vperm.xlu0 %857, %v852
    %v859 = vpop.permute.xlu0 %858
    %860 = vset.pattern.permute.xlu0 0
    %861 = vperm.xlu0 %860, %v854
    %v862 = vpop.permute.xlu0 %861
    %v863 = vlaneseq
    %v864 = vshrl.u32 %v863, 7
    %v865 = vsub.s32 %v822, %v864
    %v866 = vrot.slane %v859, %v865
    %v867 = vlaneseq
    %v868 = vshrl.u32 %v867, 7
    %v869 = vsub.s32 %v822, %v868
    %v870 = vrot.slane %v862, %v869
    %v871 = vsel %vm831, %v870, %v866
    %v873 = vsel %vm834, %v871, 0.0
    %874 = vadd.xlane.f32.xlu0 %v873
    %v875 = vpop.xlane.xlu0 %874
    %v877 = vlaneseq
    %v878 = vshrl.u32 %v877, 7
    %v879 = vsub.s32 0, %v878
    %v880 = vrot.slane %v875, %v879
    %v881 = vlaneseq
    %v882 = vshrl.u32 %v881, 7
    %v883 = vsub.s32 1, %v882
    %v884 = vrot.slane %v875, %v883
    %v887 = vrcp.pop %v880
    %v888 = vmul.f32 %v852, %v887
    %v889 = vrcp.pop %v884
    %v890 = vmul.f32 %v854, %v889
    %v892 = vlaneseq
    %v893 = vshrl.u32 %v892, 7
    %v894 = vsub.s32 0, %v893
    %v895 = vrot.slane %v574, %v894
    %897 = vbcast.lane.b32.xlu0 %v895, 256
    %v898 = vpop.permute.xlu0 %897
    %v899 = vlaneseq
    %v900 = vshrl.u32 %v899, 7
    %v901 = vsub.s32 1, %v900
    %v902 = vrot.slane %v574, %v901
    %904 = vbcast.lane.b32.xlu0 %v902, 256
    %v905 = vpop.permute.xlu0 %904
    %v908 = vmul.f32 %v888, %v898
    %v909 = vmul.f32 %v890, %v905
    %912 = vset.pattern.permute.xlu0 0
    %913 = vperm.xlu0 %912, %v908
    %v914 = vpop.permute.xlu0 %913
    %915 = vset.pattern.permute.xlu0 0
    %916 = vperm.xlu0 %915, %v909
    %v917 = vpop.permute.xlu0 %916
    %v918 = vlaneseq
    %v919 = vshrl.u32 %v918, 7
    %v920 = vsub.s32 %v822, %v919
    %v921 = vrot.slane %v914, %v920
    %v922 = vlaneseq
    %v923 = vshrl.u32 %v922, 7
    %v924 = vsub.s32 %v822, %v923
    %v925 = vrot.slane %v917, %v924
    %v926 = vsel %vm831, %v925, %v921
    %v928 = vsel %vm834, %v926, 0.0
    %929 = vadd.xlane.f32.xlu0 %v928
    %v930 = vpop.xlane.xlu0 %929
    %v931 = vadd.f32 %v930, 1e-12
    %v933 = vlaneseq
    %v934 = vshrl.u32 %v933, 7
    %v935 = vsub.s32 0, %v934
    %v936 = vrot.slane %v931, %v935
    %v937 = vlaneseq
    %v938 = vshrl.u32 %v937, 7
    %v939 = vsub.s32 1, %v938
    %v940 = vrot.slane %v931, %v939
    %v943 = vrcp.pop %v936
    %v944 = vmul.f32 %v908, %v943
    %v945 = vrcp.pop %v940
    %v946 = vmul.f32 %v909, %v945
    %948 = vset.pattern.permute.xlu0 0
    %949 = vperm.xlu0 %948, %v944
    %v950 = vpop.permute.xlu0 %949
    %v951 = vlaneseq
    %v952 = vshrl.u32 %v951, 7
    %v953 = vsub.s32 %v822, %v952
    %v954 = vrot.slane %v950, %v953
    %vm955 = vcmask 64512
    %v956 = vsel %vm955, %v954, 0
    %958 = vmatprep.subr.mxu0 0.0
    %959 = vmatpush1.msra.mxu0 %v570
    %960 = vmatprep.subr.mxu0 0.0
    %961 = vmatpush1.msra.mxu0 0.0
    %962 = vmatprep.subr.mxu0 0.0
    %963 = vmatpush1.msra.mxu0 0.0
    %964 = vmatprep.subr.mxu0 0.0
    %965 = vmatpush1.msra.mxu0 0.0
    %966 = vmatprep.subr.mxu0 0.0
    %967 = vmatpush1.msra.mxu0 0.0
    %968 = vmatprep.subr.mxu0 0.0
    %969 = vmatpush1.msra.mxu0 0.0
    %970 = vmatprep.subr.mxu0 0.0
    %971 = vmatpush1.msra.mxu0 0.0
    %972 = vmatprep.subr.mxu0 0.0
    %973 = vmatpush1.msra.mxu0 0.0
    %974 = vmatprep.subr.mxu0 0.0
    %975 = vmatpush1.msra.mxu0 0.0
    %976 = vmatprep.subr.mxu0 0.0
    %977 = vmatpush1.msra.mxu0 0.0
    %978 = vmatprep.subr.mxu0 0.0
    %979 = vmatpush1.msra.mxu0 0.0
    %980 = vmatprep.subr.mxu0 0.0
    %981 = vmatpush1.msra.mxu0 0.0
    %982 = vmatprep.subr.mxu0 0.0
    %983 = vmatpush1.msra.mxu0 0.0
    %984 = vmatprep.subr.mxu0 0.0
    %985 = vmatpush1.msra.mxu0 0.0
    %986 = vmatprep.subr.mxu0 0.0
    %987 = vmatpush1.msra.mxu0 0.0
    %988 = vmatprep.subr.mxu0 0.0
    %989 = vmatpush1.msra.mxu0 0.0
    %990 = vmatprep.subr.mxu0 0.0
    %991 = vmatpush1.msra.mxu0 0.0
    %992 = vmatprep.subr.mxu0 0.0
    %993 = vmatpush1.msra.mxu0 0.0
    %994 = vmatprep.subr.mxu0 0.0
    %995 = vmatpush1.msra.mxu0 0.0
    %996 = vmatprep.subr.mxu0 0.0
    %997 = vmatpush1.msra.mxu0 0.0
    %998 = vmatprep.subr.mxu0 0.0
    %999 = vmatpush1.msra.mxu0 0.0
    %1000 = vmatprep.subr.mxu0 0.0
    %1001 = vmatpush1.msra.mxu0 0.0
    %1002 = vmatprep.subr.mxu0 0.0
    %1003 = vmatpush1.msra.mxu0 0.0
    %1004 = vmatprep.subr.mxu0 0.0
    %1005 = vmatpush1.msra.mxu0 0.0
    %1006 = vmatprep.subr.mxu0 0.0
    %1007 = vmatpush1.msra.mxu0 0.0
    %1008 = vmatprep.subr.mxu0 0.0
    %1009 = vmatpush1.msra.mxu0 0.0
    %1010 = vmatprep.subr.mxu0 0.0
    %1011 = vmatpush1.msra.mxu0 0.0
    %1012 = vmatprep.subr.mxu0 0.0
    %1013 = vmatpush1.msra.mxu0 0.0
    %1014 = vmatprep.subr.mxu0 0.0
    %1015 = vmatpush1.msra.mxu0 0.0
    %1016 = vmatprep.subr.mxu0 0.0
    %1017 = vmatpush1.msra.mxu0 0.0
    %1018 = vmatprep.subr.mxu0 0.0
    %1019 = vmatpush1.msra.mxu0 0.0
    %1020 = vmatprep.subr.mxu0 0.0
    %1021 = vmatpush1.msra.mxu0 0.0
    %1022 = vmatprep.mubr.f32.mxu0 0.0
    %1023 = vmatmul.mubr.f32.gmra.mrb[0].mxu0 %v956
    %v1024 = vpop.f32.mrb[0].mxu0
    %v1025 = vadd.f32 0.0, %v1024
    %v1026 = vpop.f32.mrb[0].mxu0
    %1027 = vdwg.mxu0
    %1029 = vset.pattern.permute.xlu0 0
    %1030 = vperm.xlu0 %1029, %v946
    %v1031 = vpop.permute.xlu0 %1030
    %v1032 = vlaneseq
    %v1033 = vshrl.u32 %v1032, 7
    %v1034 = vsub.s32 %v822, %v1033
    %v1035 = vrot.slane %v1031, %v1034
    %v1036 = vsel %vm955, %v1035, 0
    %1038 = vmatprep.subr.mxu0 0.0
    %1039 = vmatpush1.msra.mxu0 %v571
    %1040 = vmatprep.subr.mxu0 0.0
    %1041 = vmatpush1.msra.mxu0 0.0
    %1042 = vmatprep.subr.mxu0 0.0
    %1043 = vmatpush1.msra.mxu0 0.0
    %1044 = vmatprep.subr.mxu0 0.0
    %1045 = vmatpush1.msra.mxu0 0.0
    %1046 = vmatprep.subr.mxu0 0.0
    %1047 = vmatpush1.msra.mxu0 0.0
    %1048 = vmatprep.subr.mxu0 0.0
    %1049 = vmatpush1.msra.mxu0 0.0
    %1050 = vmatprep.subr.mxu0 0.0
    %1051 = vmatpush1.msra.mxu0 0.0
    %1052 = vmatprep.subr.mxu0 0.0
    %1053 = vmatpush1.msra.mxu0 0.0
    %1054 = vmatprep.subr.mxu0 0.0
    %1055 = vmatpush1.msra.mxu0 0.0
    %1056 = vmatprep.subr.mxu0 0.0
    %1057 = vmatpush1.msra.mxu0 0.0
    %1058 = vmatprep.subr.mxu0 0.0
    %1059 = vmatpush1.msra.mxu0 0.0
    %1060 = vmatprep.subr.mxu0 0.0
    %1061 = vmatpush1.msra.mxu0 0.0
    %1062 = vmatprep.subr.mxu0 0.0
    %1063 = vmatpush1.msra.mxu0 0.0
    %1064 = vmatprep.subr.mxu0 0.0
    %1065 = vmatpush1.msra.mxu0 0.0
    %1066 = vmatprep.subr.mxu0 0.0
    %1067 = vmatpush1.msra.mxu0 0.0
    %1068 = vmatprep.subr.mxu0 0.0
    %1069 = vmatpush1.msra.mxu0 0.0
    %1070 = vmatprep.subr.mxu0 0.0
    %1071 = vmatpush1.msra.mxu0 0.0
    %1072 = vmatprep.subr.mxu0 0.0
    %1073 = vmatpush1.msra.mxu0 0.0
    %1074 = vmatprep.subr.mxu0 0.0
    %1075 = vmatpush1.msra.mxu0 0.0
    %1076 = vmatprep.subr.mxu0 0.0
    %1077 = vmatpush1.msra.mxu0 0.0
    %1078 = vmatprep.subr.mxu0 0.0
    %1079 = vmatpush1.msra.mxu0 0.0
    %1080 = vmatprep.subr.mxu0 0.0
    %1081 = vmatpush1.msra.mxu0 0.0
    %1082 = vmatprep.subr.mxu0 0.0
    %1083 = vmatpush1.msra.mxu0 0.0
    %1084 = vmatprep.subr.mxu0 0.0
    %1085 = vmatpush1.msra.mxu0 0.0
    %1086 = vmatprep.subr.mxu0 0.0
    %1087 = vmatpush1.msra.mxu0 0.0
    %1088 = vmatprep.subr.mxu0 0.0
    %1089 = vmatpush1.msra.mxu0 0.0
    %1090 = vmatprep.subr.mxu0 0.0
    %1091 = vmatpush1.msra.mxu0 0.0
    %1092 = vmatprep.subr.mxu0 0.0
    %1093 = vmatpush1.msra.mxu0 0.0
    %1094 = vmatprep.subr.mxu0 0.0
    %1095 = vmatpush1.msra.mxu0 0.0
    %1096 = vmatprep.subr.mxu0 0.0
    %1097 = vmatpush1.msra.mxu0 0.0
    %1098 = vmatprep.subr.mxu0 0.0
    %1099 = vmatpush1.msra.mxu0 0.0
    %1100 = vmatprep.subr.mxu0 0.0
    %1101 = vmatpush1.msra.mxu0 0.0
    %1102 = vmatprep.mubr.f32.mxu0 0.0
    %1103 = vmatmul.mubr.f32.gmra.mrb[0].mxu0 %v1036
    %v1104 = vpop.f32.mrb[0].mxu0
    %v1105 = vadd.f32 0.0, %v1104
    %v1106 = vpop.f32.mrb[0].mxu0
    %1107 = vdwg.mxu0
    %v1108 = vsel %vm831, %v1035, %v954
    %v1110 = vadd.f32 %v575, %v1108
    %v1111 = vld [vmem:[%s39] sm:$0x1]
    %v1113 = vlaneseq
    %v1114 = vshrl.u32 %v1113, 7
    %v1115 = vsub.s32 0, %v1114
    %v1116 = vrot.slane %v1111, %v1115
    %v1118 = vmul.f32 %v1025, %v1116
    %v1119 = vmul.f32 %v1105, %v1116
    %v1122 = vrot.slane %v1119, 7
    %v1123 = vsel %vm831, %v1122, %v1118
    %vm1125 = vcmask 517120
    %v1126 = vsel %vm1125, %v1123, 0.0
    %1127 = vadd.xlane.f32.xlu0 %v1126
    %v1128 = vpop.xlane.xlu0 %1127
    %v1129 = vld [vmem:[%s41] sm:$0x1]
    %v1131 = vlaneseq
    %v1132 = vshrl.u32 %v1131, 7
    %v1133 = vsub.s32 0, %v1132
    %v1134 = vrot.slane %v1129, %v1133
    %1135 = vrot.lane.b32.xlu0 %v1134, 96
    %v1136 = vpop.permute.xlu0 %1135
    %v1138 = vmul.f32 %v569, %v1136
    %1140 = vrot.lane.b32.xlu0 %v1138, 32
    %v1141 = vpop.permute.xlu0 %1140
    %vm1143 = vcmask 254976
    %v1144 = vsel %vm1143, %v1141, 0.0
    %1145 = vadd.xlane.f32.xlu0 %v1144
    %v1146 = vpop.xlane.xlu0 %1145
    %v1147 = vadd.f32 %v1128, %v1146
    %v1148 = vld [vmem:[%s43] sm:$0x1]
    %v1150 = vlaneseq
    %v1151 = vshrl.u32 %v1150, 7
    %v1152 = vsub.s32 0, %v1151
    %v1153 = vrot.slane %v1148, %v1152
    %1154 = vrot.lane.b32.xlu0 %v1153, 32
    %v1155 = vpop.permute.xlu0 %1154
    %v1157 = vmul.f32 %v563, %v1155
    %1159 = vrot.lane.b32.xlu0 %v1157, 96
    %v1160 = vpop.permute.xlu0 %1159
    %v1162 = vsel %vm1143, %v1160, 0.0
    %1163 = vadd.xlane.f32.xlu0 %v1162
    %v1164 = vpop.xlane.xlu0 %1163
    %v1165 = vadd.f32 %v1147, %v1164
    %v1166 = vld [vmem:[%s45] sm:$0x1]
    %v1168 = vlaneseq
    %v1169 = vshrl.u32 %v1168, 7
    %v1170 = vsub.s32 0, %v1169
    %v1171 = vrot.slane %v1166, %v1170
    %v1173 = vmul.f32 %v380, %v1171
    %vm1174 = vcmask 123904
    %v1175 = vsel %vm1174, %v1173, 0.0
    %1176 = vadd.xlane.f32.xlu0 %v1175
    %v1177 = vpop.xlane.xlu0 %1176
    %v1178 = vadd.f32 %v1165, %v1177
    %v1179 = vld [vmem:[#allocation2] sm:$0x1]
    %v1181 = vlaneseq
    %v1182 = vshrl.u32 %v1181, 7
    %v1183 = vsub.s32 0, %v1182
    %v1184 = vrot.slane %v1179, %v1183
    %v1186 = vadd.f32 %v1178, %v1184
    %v1187 = vxor.u32 %v1186, 2147483648
    %v1188 = vmul.f32 %v1187, 1.442695
    %v1189 = vpow.pop %v1188
    %v1190 = vadd.f32 %v1189, 1.0
    %v1191 = vrcp.pop %v1190
    %v1192 = vmul.f32 1.0, %v1191
    %v1193 = vld [vmem:[%s49] sm:$0xff]
    %v1194 = vld [vmem:[%s49 + $0x8] sm:$0xff]
    %v1195 = vld [vmem:[%s49 + $0x10] sm:$0xff]
    %v1196 = vld [vmem:[%s49 + $0x18] sm:$0xff]
    %v1197 = vld [vmem:[%s51] sm:$0xff]
    %v1198 = vld [vmem:[%s51 + $0x8] sm:$0xff]
    %v1199 = vld [vmem:[%s51 + $0x10] sm:$0xff]
    %v1200 = vld [vmem:[%s51 + $0x18] sm:$0xff]
    %v1201 = vld [vmem:[%s51 + $0x20] sm:$0xff]
    %v1202 = vld [vmem:[%s51 + $0x28] sm:$0xff]
    %v1203 = vld [vmem:[%s51 + $0x30] sm:$0xff]
    %v1204 = vld [vmem:[%s51 + $0x38] sm:$0xff]
    %v1207 = vrot.slane %v1105, 7
    %v1208 = vsel %vm831, %v1207, %v1025
    %v1209 = vsel %vm299, %v1208, 0
    %1211 = vmatprep.subr.mxu0 0.0
    %1212 = vmatpush1.msra.mxu0 %v1197
    %1213 = vmatprep.subr.mxu0 0.0
    %1214 = vmatpush1.msra.mxu0 %v1198
    %1215 = vmatprep.subr.mxu0 0.0
    %1216 = vmatpush1.msra.mxu0 %v1199
    %1217 = vmatprep.subr.mxu0 0.0
    %1218 = vmatpush1.msra.mxu0 %v1200
    %1219 = vmatprep.subr.mxu0 0.0
    %1220 = vmatpush1.msra.mxu0 %v1201
    %1221 = vmatprep.subr.mxu0 0.0
    %1222 = vmatpush1.msra.mxu0 %v1202
    %1223 = vmatprep.subr.mxu0 0.0
    %1224 = vmatpush1.msra.mxu0 %v1203
    %1225 = vmatprep.subr.mxu0 0.0
    %1226 = vmatpush1.msra.mxu0 %v1204
    %1227 = vmatprep.subr.mxu0 0.0
    %1228 = vmatpush1.msra.mxu0 0.0
    %1229 = vmatprep.subr.mxu0 0.0
    %1230 = vmatpush1.msra.mxu0 0.0
    %1231 = vmatprep.subr.mxu0 0.0
    %1232 = vmatpush1.msra.mxu0 0.0
    %1233 = vmatprep.subr.mxu0 0.0
    %1234 = vmatpush1.msra.mxu0 0.0
    %1235 = vmatprep.subr.mxu0 0.0
    %1236 = vmatpush1.msra.mxu0 0.0
    %1237 = vmatprep.subr.mxu0 0.0
    %1238 = vmatpush1.msra.mxu0 0.0
    %1239 = vmatprep.subr.mxu0 0.0
    %1240 = vmatpush1.msra.mxu0 0.0
    %1241 = vmatprep.subr.mxu0 0.0
    %1242 = vmatpush1.msra.mxu0 0.0
    %1243 = vmatprep.subr.mxu0 0.0
    %1244 = vmatpush1.msra.mxu0 0.0
    %1245 = vmatprep.subr.mxu0 0.0
    %1246 = vmatpush1.msra.mxu0 0.0
    %1247 = vmatprep.subr.mxu0 0.0
    %1248 = vmatpush1.msra.mxu0 0.0
    %1249 = vmatprep.subr.mxu0 0.0
    %1250 = vmatpush1.msra.mxu0 0.0
    %1251 = vmatprep.subr.mxu0 0.0
    %1252 = vmatpush1.msra.mxu0 0.0
    %1253 = vmatprep.subr.mxu0 0.0
    %1254 = vmatpush1.msra.mxu0 0.0
    %1255 = vmatprep.subr.mxu0 0.0
    %1256 = vmatpush1.msra.mxu0 0.0
    %1257 = vmatprep.subr.mxu0 0.0
    %1258 = vmatpush1.msra.mxu0 0.0
    %1259 = vmatprep.subr.mxu0 0.0
    %1260 = vmatpush1.msra.mxu0 0.0
    %1261 = vmatprep.subr.mxu0 0.0
    %1262 = vmatpush1.msra.mxu0 0.0
    %1263 = vmatprep.subr.mxu0 0.0
    %1264 = vmatpush1.msra.mxu0 0.0
    %1265 = vmatprep.subr.mxu0 0.0
    %1266 = vmatpush1.msra.mxu0 0.0
    %1267 = vmatprep.subr.mxu0 0.0
    %1268 = vmatpush1.msra.mxu0 0.0
    %1269 = vmatprep.subr.mxu0 0.0
    %1270 = vmatpush1.msra.mxu0 0.0
    %1271 = vmatprep.subr.mxu0 0.0
    %1272 = vmatpush1.msra.mxu0 0.0
    %1273 = vmatprep.subr.mxu0 0.0
    %1274 = vmatpush1.msra.mxu0 0.0
    %1275 = vmatprep.mubr.f32.mxu0 0.0
    %1276 = vmatmul.mubr.f32.gmra.mrb[0].mxu0 %v1209
    %v1277 = vpop.f32.mrb[0].mxu0
    %v1278 = vadd.f32 0.0, %v1277
    %v1279 = vpop.f32.mrb[0].mxu0
    %1280 = vdwg.mxu0
    %1281 = vmatprep.subr.mxu0 0.0
    %1282 = vmatpush1.msra.mxu0 %v1193
    %1283 = vmatprep.subr.mxu0 0.0
    %1284 = vmatpush1.msra.mxu0 %v1194
    %1285 = vmatprep.subr.mxu0 0.0
    %1286 = vmatpush1.msra.mxu0 %v1195
    %1287 = vmatprep.subr.mxu0 0.0
    %1288 = vmatpush1.msra.mxu0 %v1196
    %1289 = vmatprep.subr.mxu0 0.0
    %1290 = vmatpush1.msra.mxu0 0.0
    %1291 = vmatprep.subr.mxu0 0.0
    %1292 = vmatpush1.msra.mxu0 0.0
    %1293 = vmatprep.subr.mxu0 0.0
    %1294 = vmatpush1.msra.mxu0 0.0
    %1295 = vmatprep.subr.mxu0 0.0
    %1296 = vmatpush1.msra.mxu0 0.0
    %1297 = vmatprep.subr.mxu0 0.0
    %1298 = vmatpush1.msra.mxu0 0.0
    %1299 = vmatprep.subr.mxu0 0.0
    %1300 = vmatpush1.msra.mxu0 0.0
    %1301 = vmatprep.subr.mxu0 0.0
    %1302 = vmatpush1.msra.mxu0 0.0
    %1303 = vmatprep.subr.mxu0 0.0
    %1304 = vmatpush1.msra.mxu0 0.0
    %1305 = vmatprep.subr.mxu0 0.0
    %1306 = vmatpush1.msra.mxu0 0.0
    %1307 = vmatprep.subr.mxu0 0.0
    %1308 = vmatpush1.msra.mxu0 0.0
    %1309 = vmatprep.subr.mxu0 0.0
    %1310 = vmatpush1.msra.mxu0 0.0
    %1311 = vmatprep.subr.mxu0 0.0
    %1312 = vmatpush1.msra.mxu0 0.0
    %1313 = vmatprep.subr.mxu0 0.0
    %1314 = vmatpush1.msra.mxu0 0.0
    %1315 = vmatprep.subr.mxu0 0.0
    %1316 = vmatpush1.msra.mxu0 0.0
    %1317 = vmatprep.subr.mxu0 0.0
    %1318 = vmatpush1.msra.mxu0 0.0
    %1319 = vmatprep.subr.mxu0 0.0
    %1320 = vmatpush1.msra.mxu0 0.0
    %1321 = vmatprep.subr.mxu0 0.0
    %1322 = vmatpush1.msra.mxu0 0.0
    %1323 = vmatprep.subr.mxu0 0.0
    %1324 = vmatpush1.msra.mxu0 0.0
    %1325 = vmatprep.subr.mxu0 0.0
    %1326 = vmatpush1.msra.mxu0 0.0
    %1327 = vmatprep.subr.mxu0 0.0
    %1328 = vmatpush1.msra.mxu0 0.0
    %1329 = vmatprep.subr.mxu0 0.0
    %1330 = vmatpush1.msra.mxu0 0.0
    %1331 = vmatprep.subr.mxu0 0.0
    %1332 = vmatpush1.msra.mxu0 0.0
    %1333 = vmatprep.subr.mxu0 0.0
    %1334 = vmatpush1.msra.mxu0 0.0
    %1335 = vmatprep.subr.mxu0 0.0
    %1336 = vmatpush1.msra.mxu0 0.0
    %1337 = vmatprep.subr.mxu0 0.0
    %1338 = vmatpush1.msra.mxu0 0.0
    %1339 = vmatprep.subr.mxu0 0.0
    %1340 = vmatpush1.msra.mxu0 0.0
    %1341 = vmatprep.subr.mxu0 0.0
    %1342 = vmatpush1.msra.mxu0 0.0
    %1343 = vmatprep.subr.mxu0 0.0
    %1344 = vmatpush1.msra.mxu0 0.0
    %1345 = vmatprep.mubr.f32.mxu0 0.0
    %1346 = vmatmul.mubr.f32.gmra.mrb[0].mxu0 %v665
    %v1347 = vpop.f32.mrb[0].mxu0
    %v1348 = vadd.f32 %v1278, %v1347
    %v1349 = vpop.f32.mrb[0].mxu0
    %1350 = vdwg.mxu0
    %v1351 = vld [vmem:[%s53] sm:$0x1]
    %v1353 = vlaneseq
    %v1354 = vshrl.u32 %v1353, 7
    %v1355 = vsub.s32 0, %v1354
    %v1356 = vrot.slane %v1351, %v1355
    %v1358 = vadd.f32 %v1348, %v1356
    %v1359 = vpack.c.bf16 %v1358, %v1358
    %vm1360 = vcmask 253952
    %1361 = vst.msk [vmem:[#allocation15] sm:$0x1] %vm1360, %v1359
    %1363 = vrot.lane.b32.xlu0 %v1208, 64
    %v1364 = vpop.permute.xlu0 %1363
    %v1366 = vsel %vm387, %v664, %v563
    %v1367 = vsel %vm299, %v1366, %v1364
    %v1370 = vcombine.low %v1367, %v1192
    %v1372 = vunpack.c.l.s4 1983009808
    %v1373 = vunpack.c.0.s8 %v1372
    %v1374 = vlaneseq
    %v1375 = vshrl.u32 %v1374, 7
    %v1376 = vsub.s32 %v1373, %v1375
    %v1377 = vrot.slane %v1370, %v1376
    %vm1379 = vcmask 1041408
    %vm1380 = vcmask 3074
    %vm1381 = vmor %vm1380, %vm1379
    %1382 = vst.msk [vmem:[#allocation16] sm:$0xf] %vm1381, %v1377
    %1383 = vst.msk [vmem:[#allocation18] sm:$0x3] %vm834, %v1108
    %1384 = vst.msk [vmem:[#allocation19] sm:$0x3] %vm834, %v1110
    // Predicated region
    $region138: #{tpu_custom_call.1} parent=1 // pred_check
      _
    $region139: #{tpu_custom_call.1} parent=1 // pred_check_branch
      %1386 = sbr.rel (0) target = $region141
    $region140: #{tpu_custom_call.1} parent=1 // pred_region
      %s1388 = ssub.s32 16, 16
      %1389 = vsyncadd [#allocation5], %s1388
      %s1391 = sshll.u32 [#allocation15], 4
      %s1392 = int_to_ptr.vmem [resolvable:$true] %s1391
      %1394 = dma.vmem_to_hbm [thread:$0]  %s1392, 16, %s55, [#allocation5]
    $region141: #{tpu_custom_call.1} parent=1 // pred_fallthru
      _
    // Predicated region
    $region142: #{tpu_custom_call.1} parent=1 // pred_check
      _
    $region143: #{tpu_custom_call.1} parent=1 // pred_check_branch
      %1396 = sbr.rel (0) target = $region145
    $region144: #{tpu_custom_call.1} parent=1 // pred_region
      %s1398 = ssub.s32 64, 64
      %1399 = vsyncadd [#allocation17], %s1398
      %s1401 = sshll.u32 [#allocation16], 4
      %s1402 = int_to_ptr.vmem [resolvable:$true] %s1401
      %1404 = dma.vmem_to_hbm [thread:$0]  %s1402, 64, %s57, [#allocation17]
    $region145: #{tpu_custom_call.1} parent=1 // pred_fallthru
      _
    // Predicated region
    $region146: #{tpu_custom_call.1} parent=1 // pred_check
      _
    $region147: #{tpu_custom_call.1} parent=1 // pred_check_branch
      %1406 = sbr.rel (0) target = $region149
    $region148: #{tpu_custom_call.1} parent=1 // pred_region
      %s1408 = ssub.s32 32, 32
      %1409 = vsyncadd [#allocation17], %s1408
      %s1411 = sshll.u32 [#allocation18], 4
      %s1412 = int_to_ptr.vmem [resolvable:$true] %s1411
      %1414 = dma.vmem_to_hbm [thread:$0]  %s1412, 32, %s59, [#allocation17]
    $region149: #{tpu_custom_call.1} parent=1 // pred_fallthru
      _
    // Predicated region
    $region150: #{tpu_custom_call.1} parent=1 // pred_check
      _
    $region151: #{tpu_custom_call.1} parent=1 // pred_check_branch
      %1416 = sbr.rel (0) target = $region153
    $region152: #{tpu_custom_call.1} parent=1 // pred_region
      %s1418 = ssub.s32 32, 32
      %1419 = vsyncadd [#allocation20], %s1418
      %s1421 = sshll.u32 [#allocation19], 4
      %s1422 = int_to_ptr.vmem [resolvable:$true] %s1421
      %1424 = dma.vmem_to_hbm [thread:$0]  %s1422, 32, %s61, [#allocation20]
    $region153: #{tpu_custom_call.1} parent=1 // pred_fallthru
      _
    // Predicated region
    $region154: #{tpu_custom_call.1} parent=1 // pred_check
      _
    $region155: #{tpu_custom_call.1} parent=1 // pred_check_branch
      %1426 = sbr.rel (0) target = $region157
    $region156: #{tpu_custom_call.1} parent=1 // pred_region
      %1427 = dma.done [#allocation5], 16
    $region157: #{tpu_custom_call.1} parent=1 // pred_fallthru
      _
    // Predicated region
    $region158: #{tpu_custom_call.1} parent=1 // pred_check
      _
    $region159: #{tpu_custom_call.1} parent=1 // pred_check_branch
      %1429 = sbr.rel (0) target = $region161
    $region160: #{tpu_custom_call.1} parent=1 // pred_region
      %1430 = dma.done [#allocation17], 64
    $region161: #{tpu_custom_call.1} parent=1 // pred_fallthru
      _
    // Predicated region
    $region162: #{tpu_custom_call.1} parent=1 // pred_check
      _
    $region163: #{tpu_custom_call.1} parent=1 // pred_check_branch
      %1432 = sbr.rel (0) target = $region165
    $region164: #{tpu_custom_call.1} parent=1 // pred_region
      %1433 = dma.done [#allocation17], 32
    $region165: #{tpu_custom_call.1} parent=1 // pred_fallthru
      _
    // Predicated region
    $region166: #{tpu_custom_call.1} parent=1 // pred_check
      _
    $region167: #{tpu_custom_call.1} parent=1 // pred_check_branch
      %1435 = sbr.rel (0) target = $region169
    $region168: #{tpu_custom_call.1} parent=1 // pred_region
      %1436 = dma.done [#allocation20], 32
    $region169: #{tpu_custom_call.1} parent=1 // pred_fallthru
      _
    %1437 = vsyncpa [#allocation4], 1
    %1438 = vsyncpa [#allocation7], 1
    %1439 = vsyncpa [#allocation10], 1
    %1440 = vsyncpa [#allocation13], 1
    %1441 = vsyncpa [#allocation5], 1
    %1442 = vsyncpa [#allocation17], 1
    %1443 = vsyncpa [#allocation20], 1

</llo_original>
